<compile_context>
chip_gen: v5e
topology: v5e:2x2
jax: 0.10.0
libtpu: 0.0.40
codegen_flags: <defaults>
</compile_context>

<pallas_src>
import jax
import jax.numpy as jnp
import numpy as np
from jax import lax
from jax.experimental import pallas as pl
from jax.experimental.pallas import tpu as pltpu

C_IN, C_OUT, K, STRIDE, PAD, OUT_PAD = 3, 20, 13, 6, 4, 1
TAPS = -(-K // STRIDE)               # 3 taps per spatial dim per output phase
KDIM = C_IN * TAPS * TAPS            # 27 real contraction elements
KP = 32                              # contraction dim padded to a sublane multiple
NCOLS = STRIDE * STRIDE * C_OUT      # 720 real output columns, ordered (py, px, co)
NCOLS_PAD = 768                      # 6*128: lane-dense stores, clean 128/256 MXU tiles


def _matmul_bias_relu_kernel(a_ref, w_ref, b_ref, o_ref):
    # a: (tm, KP) bf16, w: (KP, NCOLS_PAD) bf16, b: (1, NCOLS_PAD) f32, o: (tm, NCOLS_PAD) f32
    acc = jnp.dot(a_ref[...], w_ref[...], preferred_element_type=jnp.float32)
    o_ref[...] = jnp.maximum(acc + b_ref[...], 0.0).astype(o_ref.dtype)


def _round_up(x, m):
    return (x + m - 1) // m * m


def _choose_tiling(m, max_tm=2048):
    """One block unless M genuinely needs more (per-step overhead ~0.35us; single-TC chips
    get zero benefit from extra steps).  When M is large, multiple "parallel" blocks let
    v7x's two TensorCores share the work."""
    nblk = max(1, -(-m // max_tm))
    tm = _round_up(-(-m // nblk), 16)        # 16: sublane tile for the bf16 LHS block
    return tm, tm * nblk, nblk


def conv_transpose_relu(x, w_pt, bias):
    """x: (N, C_IN, H, W) f32; w_pt: (C_IN, C_OUT, K, K) PyTorch ConvTranspose2d layout."""
    n, c_in, h, w = x.shape
    assert c_in == C_IN
    oh = (h - 1) * STRIDE - 2 * PAD + K + OUT_PAD
    ow = (w - 1) * STRIDE - 2 * PAD + K + OUT_PAD
    bh = (PAD + oh - 1) // STRIDE + 1        # base (stride-phase) rows per spatial dim
    bw = (PAD + ow - 1) // STRIDE + 1

    # ---------- small plain-JAX glue: build the (M, 27) LHS directly in bf16 ----------
    # TODO(synk): the A build + final pixel shuffle remain XLA glue; folding them into the
    # kernel needs a lane<->sublane relayout of the whole activation that Mosaic handles
    # less predictably than XLA's fused transpose, so it is left out for robustness.
    x_ext = jnp.pad(x.astype(jnp.bfloat16),
                    ((0, 0), (0, 0), (TAPS - 1, bh - h), (TAPS - 1, bw - w)))
    cols = [x_ext[:, :, dy:dy + bh, dx:dx + bw]
            for dy in range(TAPS) for dx in range(TAPS)]
    a = jnp.stack(cols, axis=-1)                                   # (n, ci, bh, bw, 9)
    a = jnp.transpose(a, (0, 2, 3, 1, 4)).reshape(n * bh * bw, KDIM)

    # Weight matrix: rows (ci, dy, dx), cols (py, px, co); taps with ky >= K are zero.
    w_pad = jnp.pad(w_pt, ((0, 0), (0, 0),
                           (0, TAPS * STRIDE - K), (0, TAPS * STRIDE - K)))
    w_r = w_pad.reshape(C_IN, C_OUT, TAPS, STRIDE, TAPS, STRIDE)   # (ci, co, ty, py, tx, px)
    w_r = w_r[:, :, ::-1, :, ::-1, :]                              # ty -> dy = TAPS-1-ty
    wmat = jnp.transpose(w_r, (0, 2, 4, 3, 5, 1)).reshape(KDIM, NCOLS)

    bias_row = jnp.pad(jnp.tile(bias.astype(jnp.float32), (STRIDE * STRIDE,)),
                       (0, NCOLS_PAD - NCOLS)).reshape(1, NCOLS_PAD)

    m = a.shape[0]
    tm, mp, nblk = _choose_tiling(m)
    a_p = jnp.pad(a, ((0, mp - m), (0, KP - KDIM)))                               # bf16
    w_p = jnp.pad(wmat, ((0, KP - KDIM), (0, NCOLS_PAD - NCOLS))).astype(jnp.bfloat16)

    cost = pl.CostEstimate(
        flops=2 * mp * KP * NCOLS_PAD,
        transcendentals=0,
        bytes_accessed=2 * (a_p.size + w_p.size) + 4 * (bias_row.size + mp * NCOLS_PAD))

    out_flat = pl.pallas_call(
        _matmul_bias_relu_kernel,
        out_shape=jax.ShapeDtypeStruct((mp, NCOLS_PAD), jnp.float32),
        grid=(nblk,),
        in_specs=[
            pl.BlockSpec((tm, KP), lambda i: (i, 0)),
            pl.BlockSpec((KP, NCOLS_PAD), lambda i: (0, 0)),   # weights: resident block
            pl.BlockSpec((1, NCOLS_PAD), lambda i: (0, 0)),    # bias row: resident block
        ],
        out_specs=pl.BlockSpec((tm, NCOLS_PAD), lambda i: (i, 0)),
        compiler_params=pltpu.CompilerParams(
            dimension_semantics=("parallel",),
            vmem_limit_bytes=32 * 1024 * 1024),
        cost_estimate=cost,
    )(a_p, w_p, bias_row)

    # interleave the 6x6 stride phases back onto the output grid and crop the halo
    # (the [:, :NCOLS] slice and the reshape fuse into this single XLA transpose/copy)
    out_q = out_flat[:m, :NCOLS].reshape(n, bh, bw, STRIDE, STRIDE, C_OUT)
    out_q = jnp.transpose(out_q, (0, 5, 1, 3, 2, 4)).reshape(
        n, C_OUT, STRIDE * bh, STRIDE * bw)
    return out_q[:, :, PAD:PAD + oh, PAD:PAD + ow]


if __name__ == "__main__":
    key = jax.random.PRNGKey(0)
    kx, kw, kb = jax.random.split(key, 3)

    # small-but-consistent shapes: batch=2, C_in=3 (fixed by the module), spatial 16x16
    x = jax.random.normal(kx, (2, C_IN, 16, 16), dtype=jnp.float32)
    w_pt = jax.random.normal(kw, (C_IN, C_OUT, K, K), dtype=jnp.float32) / np.sqrt(C_OUT * K * K)
    bias = jax.random.normal(kb, (C_OUT,), dtype=jnp.float32) * 0.1

    out = jax.jit(conv_transpose_relu)(x, w_pt, bias)
    out = jax.block_until_ready(out)
    assert out.shape == (2, C_OUT, 96, 96), out.shape

    # reference: lhs-dilated conv with flipped/transposed kernel == ConvTranspose2d
    rhs = jnp.transpose(w_pt[:, :, ::-1, ::-1], (1, 0, 2, 3))  # OIHW
    ref = lax.conv_general_dilated(
        x, rhs, window_strides=(1, 1),
        padding=[(K - 1 - PAD, K - 1 - PAD + OUT_PAD)] * 2,
        lhs_dilation=(STRIDE, STRIDE),
        dimension_numbers=("NCHW", "OIHW", "NCHW"))
    ref = jnp.maximum(ref + bias[None, :, None, None], 0.0)
    # bf16 matmul inputs (f32 accumulation): slightly looser tolerance than pure f32
    np.testing.assert_allclose(np.asarray(out), np.asarray(ref), atol=1e-2, rtol=1e-2)

    print("KERNEL_OK")
</pallas_src>

<mosaic_0001>
module attributes {stable_mosaic.version = 11 : i64} {
  func.func @_matmul_bias_relu_kernel(%arg0: i32, %arg1: memref<592x32xbf16, #tpu.memory_space<vmem>>, %arg2: memref<32x768xbf16, #tpu.memory_space<vmem>>, %arg3: memref<1x768xf32, #tpu.memory_space<vmem>>, %arg4: memref<592x768xf32, #tpu.memory_space<vmem>>) attributes {dimension_semantics = [#tpu.dimension_semantics<parallel>], iteration_bounds = array<i64: 1>, scalar_prefetch = 0 : i64, scratch_operands = 0 : i64, tpu.core_type = #tpu.core_type<tc>, window_params = [{transform_indices = @transform_0, window_bounds = array<i64: 592, 32>}, {pipeline_mode = #tpu.pipeline_mode<synchronous>, transform_indices = @transform_1, window_bounds = array<i64: 32, 768>}, {pipeline_mode = #tpu.pipeline_mode<synchronous>, transform_indices = @transform_2, window_bounds = array<i64: 1, 768>}, {transform_indices = @transform_3, window_bounds = array<i64: 592, 768>}]} {
    %c0 = arith.constant 0 : index
    %c0_0 = arith.constant 0 : index
    %0 = vector.load %arg1[%c0, %c0_0] : memref<592x32xbf16, #tpu.memory_space<vmem>>, vector<592x32xbf16>
    %c0_1 = arith.constant 0 : index
    %c0_2 = arith.constant 0 : index
    %1 = vector.load %arg2[%c0_1, %c0_2] : memref<32x768xbf16, #tpu.memory_space<vmem>>, vector<32x768xbf16>
    %cst = arith.constant dense<0.000000e+00> : vector<592x768xf32>
    %2 = tpu.matmul %0, %1, %cst {dimension_numbers = #tpu.dot_dimension_numbers<[1], [0], [0], [1], [0, 0, 1, 1], [], []>} : vector<592x32xbf16>, vector<32x768xbf16>, vector<592x768xf32> -> vector<592x768xf32>
    %c0_3 = arith.constant 0 : index
    %c0_4 = arith.constant 0 : index
    %3 = vector.load %arg3[%c0_3, %c0_4] : memref<1x768xf32, #tpu.memory_space<vmem>>, vector<1x768xf32>
    %4 = vector.broadcast %3 : vector<1x768xf32> to vector<592x768xf32>
    %5 = arith.addf %2, %4 : vector<592x768xf32>
    %cst_5 = arith.constant 0.000000e+00 : f32
    %6 = vector.broadcast %cst_5 : f32 to vector<592x768xf32>
    %7 = arith.maximumf %5, %6 : vector<592x768xf32>
    %c0_6 = arith.constant 0 : index
    %c0_7 = arith.constant 0 : index
    %8 = vector.load %arg4[%c0_6, %c0_7] : memref<592x768xf32, #tpu.memory_space<vmem>>, vector<592x768xf32>
    tpu.vector_store %arg4[%c0_6, %c0_7], %7 {strides = array<i32>} : memref<592x768xf32, #tpu.memory_space<vmem>>, vector<592x768xf32>,
    return
  }
  func.func @transform_0(%arg0: i32) -> (i32, i32) {
    %c0_i32 = arith.constant 0 : i32
    %c0_i32_0 = arith.constant 0 : i32
    return %arg0, %c0_i32 : i32, i32
  }
  func.func @transform_1(%arg0: i32) -> (i32, i32) {
    %c0_i32 = arith.constant 0 : i32
    %c0_i32_0 = arith.constant 0 : i32
    %c0_i32_1 = arith.constant 0 : i32
    return %c0_i32, %c0_i32_0 : i32, i32
  }
  func.func @transform_2(%arg0: i32) -> (i32, i32) {
    %c0_i32 = arith.constant 0 : i32
    %c0_i32_0 = arith.constant 0 : i32
    %c0_i32_1 = arith.constant 0 : i32
    return %c0_i32, %c0_i32_0 : i32, i32
  }
  func.func @transform_3(%arg0: i32) -> (i32, i32) {
    %c0_i32 = arith.constant 0 : i32
    %c0_i32_0 = arith.constant 0 : i32
    return %arg0, %c0_i32 : i32, i32
  }
}

</mosaic_0001>

<llo_original>
// kernel: tile.8
$region0: #{tile.8}
  #allocation2 [shape = 's32[1]{0}', space=sflag, size = 0x4, scoped, tag = 'scoped memory for tile.8']
  %s0 = inlined_call_operand.hbm [shape: f32[20], index: 0, kind: input, shape index: {}]
  %s1 = inlined_call_operand.vmem [shape: f32[36,20], index: 1, kind: output, shape index: {}]
  $region1: #{tile.8} parent=0
    #allocation0 [shape = 'u8[512]{0}', space=vmem, size = 0x400, scoped, tag = 'operand span for operand 0']
    #allocation1 [shape = 's32[1]{0}', space=sflag, size = 0x4, scoped, tag = 'scoped memory for tile.8']
    %2 = vsyncpa [#allocation1], 0
    // Predicated region
    $region2: #{tile.8} parent=1 // pred_check
      _
    $region3: #{tile.8} parent=1 // pred_check_branch
      %4 = sbr.rel (0) target = $region5
    $region4: #{tile.8} parent=1 // pred_region
      %6 = vsyncadd [#allocation1], 0
      %s8 = sshll.u32 %s0, 4
      %s9 = int_to_ptr.hbm [resolvable:$true] %s8
      %s10 = sshll.u32 [#allocation0], 4
      %s11 = int_to_ptr.vmem [resolvable:$true] %s10
      %13 = dma.hbm_to_vmem [thread:$0]  %s9, 16, %s11, [#allocation1]
    $region5: #{tile.8} parent=1 // pred_fallthru
      _
    // Predicated region
    $region6: #{tile.8} parent=1 // pred_check
      _
    $region7: #{tile.8} parent=1 // pred_check_branch
      %15 = sbr.rel (0) target = $region9
    $region8: #{tile.8} parent=1 // pred_region
      %17 = dma.done [#allocation1], 16
    $region9: #{tile.8} parent=1 // pred_fallthru
      _
    %v18 = vld [vmem:[#allocation0] ss:$0 sm:$0xff]
    %19 = vst [vmem:[%s1] sm:$0xff] %v18
    %s20 = scalar_lea.vmem %s1, 8
    %21 = vst [vmem:[%s20] sm:$0xff] %v18
    %s22 = scalar_lea.vmem %s1, 16
    %23 = vst [vmem:[%s22] sm:$0xff] %v18
    %s24 = scalar_lea.vmem %s1, 24
    %25 = vst [vmem:[%s24] sm:$0xff] %v18
    %s26 = scalar_lea.vmem %s1, 32
    %27 = vst [vmem:[%s26] sm:$0xff] %v18
    %28 = vsyncpa [#allocation1], 1

// kernel: tile.9
$region0: #{tile.9}
  %s0 = inlined_call_operand.vmem [shape: f32[36,20], index: 0, kind: input, shape index: {}]
  %s1 = inlined_call_operand.vmem [shape: f32[720], index: 1, kind: output, shape index: {}]
  %v2 = vld [vmem:[%s0] sm:$0x1]
  %s3 = scalar_lea.vmem %s0, 31
  %v4 = vld [vmem:[%s3] sm:$0x2]
  %vm5 = vcmask 1041409
  %v6 = vsel %vm5, %v4, %v2
  %vm7 = vcmask 162816
  %8 = vst.msk [vmem:[%s1] ss:$5 sm:$0x3] %vm7, %v6
  %s9 = scalar_lea.vmem %s0, 19
  %v10 = vld [vmem:[%s9] sm:$0x1]
  %s11 = scalar_lea.vmem %s0, 19
  %v12 = vld [vmem:[%s11] sm:$0x1]
  %vm13 = vcmask 31744
  %v14 = vsel %vm13, %v12, %v10
  %15 = vrot.lane.b32.xlu0 %v14, 124
  %v16 = vpop.permute.xlu0 %15
  %vm17 = vcmask 130048
  %s18 = scalar_lea.vmem %s1, 3
  %19 = vst.msk [vmem:[%s18] sm:$0x1] %vm17, %v16
  %vm20 = vcmask 1048544
  %s21 = scalar_lea.vmem %s1, 2
  %22 = vst.msk [vmem:[%s21] sm:$0x1] %vm20, %v16
  %s23 = scalar_lea.vmem %s0, 6
  %v24 = vld [vmem:[%s23] sm:$0x1]
  %s25 = scalar_lea.vmem %s0, 6
  %v26 = vld [vmem:[%s25] sm:$0x1]
  %vm27 = vcmask 64512
  %v28 = vsel %vm27, %v26, %v24
  %29 = vrot.lane.b32.xlu0 %v28, 120
  %v30 = vpop.permute.xlu0 %29
  %vm31 = vcmask 97280
  %s32 = scalar_lea.vmem %s1, 1
  %33 = vst.msk [vmem:[%s32] sm:$0x1] %vm31, %v30
  %vm34 = vcmask 1048512
  %35 = vst.msk [vmem:[%s1] sm:$0x1] %vm34, %v30
  %s36 = scalar_lea.vmem %s0, 25
  %v37 = vld [vmem:[%s36] sm:$0x1]
  %s38 = scalar_lea.vmem %s0, 25
  %v39 = vld [vmem:[%s38] sm:$0x1]
  %vm40 = vcmask 97280
  %v41 = vsel %vm40, %v39, %v37
  %42 = vrot.lane.b32.xlu0 %v41, 116
  %v43 = vpop.permute.xlu0 %42
  %vm44 = vcmask 64512
  %s45 = scalar_lea.vmem %s1, 4
  %46 = vst.msk [vmem:[%s45] sm:$0x1] %vm44, %v43
  %vm47 = vcmask 1048480
  %s48 = scalar_lea.vmem %s1, 3
  %49 = vst.msk [vmem:[%s48] sm:$0x1] %vm47, %v43
  %s50 = scalar_lea.vmem %s0, 12
  %v51 = vld [vmem:[%s50] sm:$0x1]
  %s52 = scalar_lea.vmem %s0, 12
  %v53 = vld [vmem:[%s52] sm:$0x1]
  %vm54 = vcmask 130048
  %v55 = vsel %vm54, %v53, %v51
  %56 = vrot.lane.b32.xlu0 %v55, 112
  %v57 = vpop.permute.xlu0 %56
  %vm58 = vcmask 31744
  %s59 = scalar_lea.vmem %s1, 2
  %60 = vst.msk [vmem:[%s59] sm:$0x1] %vm58, %v57
  %vm61 = vcmask 1048448
  %s62 = scalar_lea.vmem %s1, 1
  %63 = vst.msk [vmem:[%s62] sm:$0x1] %vm61, %v57
  %s64 = scalar_lea.vmem %s0, 31
  %v65 = vld [vmem:[%s64] sm:$0x1]
  %66 = vrot.lane.b32.xlu0 %v65, 108
  %v67 = vpop.permute.xlu0 %66
  %vm68 = vcmask 1048416
  %s69 = scalar_lea.vmem %s1, 4
  %70 = vst.msk [vmem:[%s69] sm:$0x1] %vm68, %v67
  %s71 = scalar_lea.vmem %s0, 18
  %v72 = vld [vmem:[%s71] sm:$0x1]
  %73 = vrot.lane.b32.xlu0 %v72, 104
  %v74 = vpop.permute.xlu0 %73
  %vm75 = vcmask 1015616
  %s76 = scalar_lea.vmem %s1, 2
  %77 = vst.msk [vmem:[%s76] sm:$0x1] %vm75, %v74
  %s78 = scalar_lea.vmem %s0, 5
  %v79 = vld [vmem:[%s78] sm:$0x1]
  %80 = vrot.lane.b32.xlu0 %v79, 100
  %v81 = vpop.permute.xlu0 %80
  %vm82 = vcmask 982816
  %83 = vst.msk [vmem:[%s1] sm:$0x1] %vm82, %v81
  %s84 = scalar_lea.vmem %s0, 24
  %v85 = vld [vmem:[%s84] sm:$0x1]
  %86 = vrot.lane.b32.xlu0 %v85, 96
  %v87 = vpop.permute.xlu0 %86
  %vm88 = vcmask 950016
  %s89 = scalar_lea.vmem %s1, 3
  %90 = vst.msk [vmem:[%s89] sm:$0x1] %vm88, %v87
  %s91 = scalar_lea.vmem %s0, 11
  %v92 = vld [vmem:[%s91] sm:$0x1]
  %93 = vrot.lane.b32.xlu0 %v92, 92
  %v94 = vpop.permute.xlu0 %93
  %vm95 = vcmask 917216
  %s96 = scalar_lea.vmem %s1, 1
  %97 = vst.msk [vmem:[%s96] sm:$0x1] %vm95, %v94
  %s98 = scalar_lea.vmem %s0, 30
  %v99 = vld [vmem:[%s98] sm:$0x1]
  %100 = vrot.lane.b32.xlu0 %v99, 88
  %v101 = vpop.permute.xlu0 %100
  %vm102 = vcmask 884416
  %s103 = scalar_lea.vmem %s1, 4
  %104 = vst.msk [vmem:[%s103] sm:$0x1] %vm102, %v101
  %s105 = scalar_lea.vmem %s0, 17
  %v106 = vld [vmem:[%s105] sm:$0x1]
  %107 = vrot.lane.b32.xlu0 %v106, 84
  %v108 = vpop.permute.xlu0 %107
  %vm109 = vcmask 851616
  %s110 = scalar_lea.vmem %s1, 2
  %111 = vst.msk [vmem:[%s110] sm:$0x1] %vm109, %v108
  %s112 = scalar_lea.vmem %s0, 4
  %v113 = vld [vmem:[%s112] sm:$0x1]
  %114 = vrot.lane.b32.xlu0 %v113, 80
  %v115 = vpop.permute.xlu0 %114
  %vm116 = vcmask 818816
  %117 = vst.msk [vmem:[%s1] sm:$0x1] %vm116, %v115
  %s118 = scalar_lea.vmem %s0, 23
  %v119 = vld [vmem:[%s118] sm:$0x1]
  %120 = vrot.lane.b32.xlu0 %v119, 76
  %v121 = vpop.permute.xlu0 %120
  %vm122 = vcmask 786016
  %s123 = scalar_lea.vmem %s1, 3
  %124 = vst.msk [vmem:[%s123] sm:$0x1] %vm122, %v121
  %s125 = scalar_lea.vmem %s0, 10
  %v126 = vld [vmem:[%s125] sm:$0x1]
  %127 = vrot.lane.b32.xlu0 %v126, 72
  %v128 = vpop.permute.xlu0 %127
  %vm129 = vcmask 753216
  %s130 = scalar_lea.vmem %s1, 1
  %131 = vst.msk [vmem:[%s130] sm:$0x1] %vm129, %v128
  %s132 = scalar_lea.vmem %s0, 29
  %v133 = vld [vmem:[%s132] sm:$0x1]
  %134 = vrot.lane.b32.xlu0 %v133, 68
  %v135 = vpop.permute.xlu0 %134
  %vm136 = vcmask 720416
  %s137 = scalar_lea.vmem %s1, 4
  %138 = vst.msk [vmem:[%s137] sm:$0x1] %vm136, %v135
  %s139 = scalar_lea.vmem %s0, 16
  %v140 = vld [vmem:[%s139] sm:$0x1]
  %141 = vrot.lane.b32.xlu0 %v140, 64
  %v142 = vpop.permute.xlu0 %141
  %vm143 = vcmask 687616
  %s144 = scalar_lea.vmem %s1, 2
  %145 = vst.msk [vmem:[%s144] sm:$0x1] %vm143, %v142
  %s146 = scalar_lea.vmem %s0, 3
  %v147 = vld [vmem:[%s146] sm:$0x1]
  %s148 = scalar_lea.vmem %s0, 34
  %v149 = vld [vmem:[%s148] sm:$0x2]
  %vm150 = vcmask 1041409
  %v151 = vsel %vm150, %v149, %v147
  %152 = vrot.lane.b32.xlu0 %v151, 60
  %v153 = vpop.permute.xlu0 %152
  %vm154 = vcmask 654816
  %155 = vst.msk [vmem:[%s1] ss:$5 sm:$0x3] %vm154, %v153
  %s156 = scalar_lea.vmem %s0, 22
  %v157 = vld [vmem:[%s156] sm:$0x1]
  %158 = vrot.lane.b32.xlu0 %v157, 56
  %v159 = vpop.permute.xlu0 %158
  %vm160 = vcmask 622016
  %s161 = scalar_lea.vmem %s1, 3
  %162 = vst.msk [vmem:[%s161] sm:$0x1] %vm160, %v159
  %s163 = scalar_lea.vmem %s0, 9
  %v164 = vld [vmem:[%s163] sm:$0x1]
  %165 = vrot.lane.b32.xlu0 %v164, 52
  %v166 = vpop.permute.xlu0 %165
  %vm167 = vcmask 589216
  %s168 = scalar_lea.vmem %s1, 1
  %169 = vst.msk [vmem:[%s168] sm:$0x1] %vm167, %v166
  %s170 = scalar_lea.vmem %s0, 28
  %v171 = vld [vmem:[%s170] sm:$0x1]
  %172 = vrot.lane.b32.xlu0 %v171, 48
  %v173 = vpop.permute.xlu0 %172
  %vm174 = vcmask 556416
  %s175 = scalar_lea.vmem %s1, 4
  %176 = vst.msk [vmem:[%s175] sm:$0x1] %vm174, %v173
  %s177 = scalar_lea.vmem %s0, 15
  %v178 = vld [vmem:[%s177] sm:$0x1]
  %179 = vrot.lane.b32.xlu0 %v178, 44
  %v180 = vpop.permute.xlu0 %179
  %vm181 = vcmask 523616
  %s182 = scalar_lea.vmem %s1, 2
  %183 = vst.msk [vmem:[%s182] sm:$0x1] %vm181, %v180
  %s184 = scalar_lea.vmem %s0, 2
  %v185 = vld [vmem:[%s184] sm:$0x1]
  %s186 = scalar_lea.vmem %s0, 33
  %v187 = vld [vmem:[%s186] sm:$0x2]
  %vm188 = vcmask 1041409
  %v189 = vsel %vm188, %v187, %v185
  %190 = vrot.lane.b32.xlu0 %v189, 40
  %v191 = vpop.permute.xlu0 %190
  %vm192 = vcmask 490816
  %193 = vst.msk [vmem:[%s1] ss:$5 sm:$0x3] %vm192, %v191
  %s194 = scalar_lea.vmem %s0, 21
  %v195 = vld [vmem:[%s194] sm:$0x1]
  %196 = vrot.lane.b32.xlu0 %v195, 36
  %v197 = vpop.permute.xlu0 %196
  %vm198 = vcmask 458016
  %s199 = scalar_lea.vmem %s1, 3
  %200 = vst.msk [vmem:[%s199] sm:$0x1] %vm198, %v197
  %s201 = scalar_lea.vmem %s0, 8
  %v202 = vld [vmem:[%s201] sm:$0x1]
  %203 = vrot.lane.b32.xlu0 %v202, 32
  %v204 = vpop.permute.xlu0 %203
  %vm205 = vcmask 425216
  %s206 = scalar_lea.vmem %s1, 1
  %207 = vst.msk [vmem:[%s206] sm:$0x1] %vm205, %v204
  %s208 = scalar_lea.vmem %s0, 27
  %v209 = vld [vmem:[%s208] sm:$0x1]
  %210 = vrot.lane.b32.xlu0 %v209, 28
  %v211 = vpop.permute.xlu0 %210
  %vm212 = vcmask 392416
  %s213 = scalar_lea.vmem %s1, 4
  %214 = vst.msk [vmem:[%s213] sm:$0x1] %vm212, %v211
  %s215 = scalar_lea.vmem %s0, 14
  %v216 = vld [vmem:[%s215] sm:$0x1]
  %217 = vrot.lane.b32.xlu0 %v216, 24
  %v218 = vpop.permute.xlu0 %217
  %vm219 = vcmask 359616
  %s220 = scalar_lea.vmem %s1, 2
  %221 = vst.msk [vmem:[%s220] sm:$0x1] %vm219, %v218
  %s222 = scalar_lea.vmem %s0, 1
  %v223 = vld [vmem:[%s222] sm:$0x1]
  %s224 = scalar_lea.vmem %s0, 32
  %v225 = vld [vmem:[%s224] sm:$0x2]
  %vm226 = vcmask 1041409
  %v227 = vsel %vm226, %v225, %v223
  %228 = vrot.lane.b32.xlu0 %v227, 20
  %v229 = vpop.permute.xlu0 %228
  %vm230 = vcmask 326816
  %231 = vst.msk [vmem:[%s1] ss:$5 sm:$0x3] %vm230, %v229
  %s232 = scalar_lea.vmem %s0, 20
  %v233 = vld [vmem:[%s232] sm:$0x1]
  %234 = vrot.lane.b32.xlu0 %v233, 16
  %v235 = vpop.permute.xlu0 %234
  %vm236 = vcmask 294016
  %s237 = scalar_lea.vmem %s1, 3
  %238 = vst.msk [vmem:[%s237] sm:$0x1] %vm236, %v235
  %s239 = scalar_lea.vmem %s0, 7
  %v240 = vld [vmem:[%s239] sm:$0x1]
  %241 = vrot.lane.b32.xlu0 %v240, 12
  %v242 = vpop.permute.xlu0 %241
  %vm243 = vcmask 261216
  %s244 = scalar_lea.vmem %s1, 1
  %245 = vst.msk [vmem:[%s244] sm:$0x1] %vm243, %v242
  %s246 = scalar_lea.vmem %s0, 26
  %v247 = vld [vmem:[%s246] sm:$0x1]
  %248 = vrot.lane.b32.xlu0 %v247, 8
  %v249 = vpop.permute.xlu0 %248
  %vm250 = vcmask 228416
  %s251 = scalar_lea.vmem %s1, 4
  %252 = vst.msk [vmem:[%s251] sm:$0x1] %vm250, %v249
  %s253 = scalar_lea.vmem %s0, 13
  %v254 = vld [vmem:[%s253] sm:$0x1]
  %255 = vrot.lane.b32.xlu0 %v254, 4
  %v256 = vpop.permute.xlu0 %255
  %vm257 = vcmask 195616
  %s258 = scalar_lea.vmem %s1, 2
  %259 = vst.msk [vmem:[%s258] sm:$0x1] %vm257, %v256

// kernel: conv_transpose_relu.1
$region0: #{conv_transpose_relu.1}
  #allocation0 [shape = 'u32[]', space=smem, size = 0x4, offset = 0x4, fixed_abs, tag = 'smem constant byte address 0x4 - core index']
  #allocation1 [shape = 'u32[72,128]{1,0:T(1,128)}', space=vmem, size = 0x9000, scoped, tag = 'internal scratch']
  %s0 = inlined_call_operand.vmem [shape: bf16[592,32], index: 0, kind: input, shape index: {}]
  %s1 = inlined_call_operand.vmem [shape: bf16[32,768], index: 1, kind: input, shape index: {}]
  %s2 = inlined_call_operand.vmem [shape: f32[1,768], index: 2, kind: input, shape index: {}]
  %s3 = inlined_call_operand.vmem [shape: f32[592,768], index: 3, kind: output, shape index: {}]
  %s4 = sld [smem:[#allocation0]]
  $region22: #{conv_transpose_relu.1} parent=0
    _
  %s6 = ssub.s32 1, %s4
  %s7 = scalar_select 0, %s6, %s4
  // Predicated region
  $region2: #{conv_transpose_relu.1} parent=0 // pred_check
    _
  $region3: #{conv_transpose_relu.1} parent=0 // pred_check_branch
    %9 = sbr.rel (0) target = $region5
  $region4: #{conv_transpose_relu.1} parent=0 // pred_region
    _
  $region5: #{conv_transpose_relu.1} parent=0 // pred_fallthru
    _
  // Predicated region
  $region6: #{conv_transpose_relu.1} parent=0 // pred_check
    _
  $region7: #{conv_transpose_relu.1} parent=0 // pred_check_branch
    %11 = sbr.rel (0) target = $region9
  $region8: #{conv_transpose_relu.1} parent=0 // pred_region
    _
  $region9: #{conv_transpose_relu.1} parent=0 // pred_fallthru
    _
  // Predicated region
  $region10: #{conv_transpose_relu.1} parent=0 // pred_check
    _
  $region11: #{conv_transpose_relu.1} parent=0 // pred_check_branch
    %13 = sbr.rel (0) target = $region13
  $region12: #{conv_transpose_relu.1} parent=0 // pred_region
    _
  $region13: #{conv_transpose_relu.1} parent=0 // pred_fallthru
    _
  %v15 = vld [vmem:[%s0] sm:$0xf]
  %v16 = vld [vmem:[%s0 + $0x4] sm:$0xf]
  %v17 = vld [vmem:[%s0 + $0x8] sm:$0xf]
  %v18 = vld [vmem:[%s0 + $0xc] sm:$0xf]
  %v19 = vld [vmem:[%s0 + $0x10] sm:$0xf]
  %v20 = vld [vmem:[%s0 + $0x14] sm:$0xf]
  %v21 = vld [vmem:[%s0 + $0x18] sm:$0xf]
  %v22 = vld [vmem:[%s0 + $0x1c] sm:$0xf]
  %v23 = vld [vmem:[%s0 + $0x20] sm:$0xf]
  %v24 = vld [vmem:[%s0 + $0x24] sm:$0xf]
  %v25 = vld [vmem:[%s0 + $0x28] sm:$0xf]
  %v26 = vld [vmem:[%s0 + $0x2c] sm:$0xf]
  %v27 = vld [vmem:[%s0 + $0x30] sm:$0xf]
  %v28 = vld [vmem:[%s0 + $0x34] sm:$0xf]
  %v29 = vld [vmem:[%s0 + $0x38] sm:$0xf]
  %v30 = vld [vmem:[%s0 + $0x3c] sm:$0xf]
  %v31 = vld [vmem:[%s0 + $0x40] sm:$0xf]
  %v32 = vld [vmem:[%s0 + $0x44] sm:$0xf]
  %v33 = vld [vmem:[%s0 + $0x48] sm:$0xf]
  %v34 = vld [vmem:[%s0 + $0x4c] sm:$0xf]
  %v35 = vld [vmem:[%s0 + $0x50] sm:$0xf]
  %v36 = vld [vmem:[%s0 + $0x54] sm:$0xf]
  %v37 = vld [vmem:[%s0 + $0x58] sm:$0xf]
  %v38 = vld [vmem:[%s0 + $0x5c] sm:$0xf]
  %v39 = vld [vmem:[%s0 + $0x60] sm:$0xf]
  %v40 = vld [vmem:[%s0 + $0x64] sm:$0xf]
  %v41 = vld [vmem:[%s0 + $0x68] sm:$0xf]
  %v42 = vld [vmem:[%s0 + $0x6c] sm:$0xf]
  %v43 = vld [vmem:[%s0 + $0x70] sm:$0xf]
  %v44 = vld [vmem:[%s0 + $0x74] sm:$0xf]
  %v45 = vld [vmem:[%s0 + $0x78] sm:$0xf]
  %v46 = vld [vmem:[%s0 + $0x7c] sm:$0xf]
  %v47 = vld [vmem:[%s0 + $0x80] sm:$0xf]
  %v48 = vld [vmem:[%s0 + $0x84] sm:$0xf]
  %v49 = vld [vmem:[%s0 + $0x88] sm:$0xf]
  %v50 = vld [vmem:[%s0 + $0x8c] sm:$0xf]
  %v51 = vld [vmem:[%s0 + $0x90] sm:$0xf]
  %v52 = vld [vmem:[%s0 + $0x94] sm:$0xf]
  %v53 = vld [vmem:[%s0 + $0x98] sm:$0xf]
  %v54 = vld [vmem:[%s0 + $0x9c] sm:$0xf]
  %v55 = vld [vmem:[%s0 + $0xa0] sm:$0xf]
  %v56 = vld [vmem:[%s0 + $0xa4] sm:$0xf]
  %v57 = vld [vmem:[%s0 + $0xa8] sm:$0xf]
  %v58 = vld [vmem:[%s0 + $0xac] sm:$0xf]
  %v59 = vld [vmem:[%s0 + $0xb0] sm:$0xf]
  %v60 = vld [vmem:[%s0 + $0xb4] sm:$0xf]
  %v61 = vld [vmem:[%s0 + $0xb8] sm:$0xf]
  %v62 = vld [vmem:[%s0 + $0xbc] sm:$0xf]
  %v63 = vld [vmem:[%s0 + $0xc0] sm:$0xf]
  %v64 = vld [vmem:[%s0 + $0xc4] sm:$0xf]
  %v65 = vld [vmem:[%s0 + $0xc8] sm:$0xf]
  %v66 = vld [vmem:[%s0 + $0xcc] sm:$0xf]
  %v67 = vld [vmem:[%s0 + $0xd0] sm:$0xf]
  %v68 = vld [vmem:[%s0 + $0xd4] sm:$0xf]
  %v69 = vld [vmem:[%s0 + $0xd8] sm:$0xf]
  %v70 = vld [vmem:[%s0 + $0xdc] sm:$0xf]
  %v71 = vld [vmem:[%s0 + $0xe0] sm:$0xf]
  %v72 = vld [vmem:[%s0 + $0xe4] sm:$0xf]
  %v73 = vld [vmem:[%s0 + $0xe8] sm:$0xf]
  %v74 = vld [vmem:[%s0 + $0xec] sm:$0xf]
  %v75 = vld [vmem:[%s0 + $0xf0] sm:$0xf]
  %v76 = vld [vmem:[%s0 + $0xf4] sm:$0xf]
  %v77 = vld [vmem:[%s0 + $0xf8] sm:$0xf]
  %v78 = vld [vmem:[%s0 + $0xfc] sm:$0xf]
  %v79 = vld [vmem:[%s0 + $0x100] sm:$0xf]
  %v80 = vld [vmem:[%s0 + $0x104] sm:$0xf]
  %v81 = vld [vmem:[%s0 + $0x108] sm:$0xf]
  %v82 = vld [vmem:[%s0 + $0x10c] sm:$0xf]
  %v83 = vld [vmem:[%s0 + $0x110] sm:$0xf]
  %v84 = vld [vmem:[%s0 + $0x114] sm:$0xf]
  %v85 = vld [vmem:[%s0 + $0x118] sm:$0xf]
  %v86 = vld [vmem:[%s0 + $0x11c] sm:$0xf]
  %v87 = vld [vmem:[%s0 + $0x120] sm:$0xf]
  %v88 = vld [vmem:[%s0 + $0x124] sm:$0xf]
  %v89 = vld [vmem:[%s1] sm:$0xff]
  %v90 = vld [vmem:[%s1 + $0x8] sm:$0xff]
  %v91 = vld [vmem:[%s1 + $0x10] sm:$0xff]
  %v92 = vld [vmem:[%s1 + $0x18] sm:$0xff]
  %v93 = vld [vmem:[%s1 + $0x20] sm:$0xff]
  %v94 = vld [vmem:[%s1 + $0x28] sm:$0xff]
  %v95 = vld [vmem:[%s1 + $0x30] sm:$0xff]
  %v96 = vld [vmem:[%s1 + $0x38] sm:$0xff]
  %v97 = vld [vmem:[%s1 + $0x40] sm:$0xff]
  %v98 = vld [vmem:[%s1 + $0x48] sm:$0xff]
  %v99 = vld [vmem:[%s1 + $0x50] sm:$0xff]
  %v100 = vld [vmem:[%s1 + $0x58] sm:$0xff]
  %v101 = vld [vmem:[%s2] sm:$0x3f]
  %v103 = vperm.slane %v101, 0
  %v104 = vperm.slane %v101, 1
  %v105 = vperm.slane %v101, 2
  %v106 = vperm.slane %v101, 3
  %v107 = vperm.slane %v101, 4
  %v108 = vperm.slane %v101, 5
  %v189 = vunpack.c.l.b16 %v15
  %v190 = vunpack.c.l.b16 %v16
  %v191 = vunpack.c.l.b16 %v17
  %v192 = vunpack.c.l.b16 %v18
  %v193 = vunpack.c.l.b16 %v19
  %v194 = vunpack.c.l.b16 %v20
  %v195 = vunpack.c.l.b16 %v21
  %v196 = vunpack.c.l.b16 %v22
  %v197 = vunpack.c.l.b16 %v23
  %v198 = vunpack.c.l.b16 %v24
  %v199 = vunpack.c.l.b16 %v25
  %v200 = vunpack.c.l.b16 %v26
  %v201 = vunpack.c.l.b16 %v27
  %v202 = vunpack.c.l.b16 %v28
  %v203 = vunpack.c.l.b16 %v29
  %v204 = vunpack.c.l.b16 %v30
  %v205 = vunpack.c.l.b16 %v31
  %v206 = vunpack.c.l.b16 %v32
  %v207 = vunpack.c.l.b16 %v33
  %v208 = vunpack.c.l.b16 %v34
  %v209 = vunpack.c.l.b16 %v35
  %v210 = vunpack.c.l.b16 %v36
  %v211 = vunpack.c.l.b16 %v37
  %v212 = vunpack.c.l.b16 %v38
  %v213 = vunpack.c.l.b16 %v39
  %v214 = vunpack.c.l.b16 %v40
  %v215 = vunpack.c.l.b16 %v41
  %v216 = vunpack.c.l.b16 %v42
  %v217 = vunpack.c.l.b16 %v43
  %v218 = vunpack.c.l.b16 %v44
  %v219 = vunpack.c.l.b16 %v45
  %v220 = vunpack.c.l.b16 %v46
  %v221 = vunpack.c.l.b16 %v47
  %v222 = vunpack.c.l.b16 %v48
  %v223 = vunpack.c.l.b16 %v49
  %v224 = vunpack.c.l.b16 %v50
  %v225 = vunpack.c.l.b16 %v51
  %v226 = vunpack.c.l.b16 %v52
  %v227 = vunpack.c.l.b16 %v53
  %v228 = vunpack.c.l.b16 %v54
  %v229 = vunpack.c.l.b16 %v55
  %v230 = vunpack.c.l.b16 %v56
  %v231 = vunpack.c.l.b16 %v57
  %v232 = vunpack.c.l.b16 %v58
  %v233 = vunpack.c.l.b16 %v59
  %v234 = vunpack.c.l.b16 %v60
  %v235 = vunpack.c.l.b16 %v61
  %v236 = vunpack.c.l.b16 %v62
  %v237 = vunpack.c.l.b16 %v63
  %v238 = vunpack.c.l.b16 %v64
  %v239 = vunpack.c.l.b16 %v65
  %v240 = vunpack.c.l.b16 %v66
  %v241 = vunpack.c.l.b16 %v67
  %v242 = vunpack.c.l.b16 %v68
  %v243 = vunpack.c.l.b16 %v69
  %v244 = vunpack.c.l.b16 %v70
  %v245 = vunpack.c.l.b16 %v71
  %v246 = vunpack.c.l.b16 %v72
  %v247 = vunpack.c.l.b16 %v73
  %v248 = vunpack.c.l.b16 %v74
  %v249 = vunpack.c.l.b16 %v75
  %v250 = vunpack.c.l.b16 %v76
  %v251 = vunpack.c.l.b16 %v77
  %v252 = vunpack.c.l.b16 %v78
  %v253 = vunpack.c.l.b16 %v79
  %v254 = vunpack.c.l.b16 %v80
  %v255 = vunpack.c.l.b16 %v81
  %v256 = vunpack.c.l.b16 %v82
  %v257 = vunpack.c.l.b16 %v83
  %v258 = vunpack.c.l.b16 %v84
  %v259 = vunpack.c.l.b16 %v85
  %v260 = vunpack.c.l.b16 %v86
  %v261 = vunpack.c.l.b16 %v87
  %v262 = vunpack.c.l.b16 %v88
  %v263 = vpack.c.b16 %v190, %v189
  %v264 = vpack.c.b16 %v192, %v191
  %v265 = vpack.c.b16 %v194, %v193
  %v266 = vpack.c.b16 %v196, %v195
  %v267 = vpack.c.b16 %v198, %v197
  %v268 = vpack.c.b16 %v200, %v199
  %v269 = vpack.c.b16 %v202, %v201
  %v270 = vpack.c.b16 %v204, %v203
  %v271 = vpack.c.b16 %v206, %v205
  %v272 = vpack.c.b16 %v208, %v207
  %v273 = vpack.c.b16 %v210, %v209
  %v274 = vpack.c.b16 %v212, %v211
  %v275 = vpack.c.b16 %v214, %v213
  %v276 = vpack.c.b16 %v216, %v215
  %v277 = vpack.c.b16 %v218, %v217
  %v278 = vpack.c.b16 %v220, %v219
  %v279 = vpack.c.b16 %v222, %v221
  %v280 = vpack.c.b16 %v224, %v223
  %v281 = vpack.c.b16 %v226, %v225
  %v282 = vpack.c.b16 %v228, %v227
  %v283 = vpack.c.b16 %v230, %v229
  %v284 = vpack.c.b16 %v232, %v231
  %v285 = vpack.c.b16 %v234, %v233
  %v286 = vpack.c.b16 %v236, %v235
  %v287 = vpack.c.b16 %v238, %v237
  %v288 = vpack.c.b16 %v240, %v239
  %v289 = vpack.c.b16 %v242, %v241
  %v290 = vpack.c.b16 %v244, %v243
  %v291 = vpack.c.b16 %v246, %v245
  %v292 = vpack.c.b16 %v248, %v247
  %v293 = vpack.c.b16 %v250, %v249
  %v294 = vpack.c.b16 %v252, %v251
  %v295 = vpack.c.b16 %v254, %v253
  %v296 = vpack.c.b16 %v256, %v255
  %v297 = vpack.c.b16 %v258, %v257
  %v298 = vpack.c.b16 %v260, %v259
  %v299 = vpack.c.b16 %v262, %v261
  %v312 = vunpack.c.l.b16 %v89
  %v313 = vunpack.c.h.b16 %v89
  %v314 = vunpack.c.l.b16 %v90
  %v315 = vunpack.c.h.b16 %v90
  %v316 = vunpack.c.l.b16 %v91
  %v317 = vunpack.c.h.b16 %v91
  %v318 = vunpack.c.l.b16 %v92
  %v319 = vunpack.c.h.b16 %v92
  %v320 = vunpack.c.l.b16 %v93
  %v321 = vunpack.c.h.b16 %v93
  %v322 = vunpack.c.l.b16 %v94
  %v323 = vunpack.c.h.b16 %v94
  %v324 = vunpack.c.l.b16 %v95
  %v325 = vunpack.c.h.b16 %v95
  %v326 = vunpack.c.l.b16 %v96
  %v327 = vunpack.c.h.b16 %v96
  %v328 = vunpack.c.l.b16 %v97
  %v329 = vunpack.c.h.b16 %v97
  %v330 = vunpack.c.l.b16 %v98
  %v331 = vunpack.c.h.b16 %v98
  %v332 = vunpack.c.l.b16 %v99
  %v333 = vunpack.c.h.b16 %v99
  %v334 = vunpack.c.l.b16 %v100
  %v335 = vunpack.c.h.b16 %v100
  %v336 = vpack.c.b16 %v318, %v312
  %v337 = vpack.c.b16 %v319, %v313
  %v338 = vpack.c.b16 %v320, %v314
  %v339 = vpack.c.b16 %v321, %v315
  %v340 = vpack.c.b16 %v322, %v316
  %v341 = vpack.c.b16 %v323, %v317
  %v342 = vpack.c.b16 %v330, %v324
  %v343 = vpack.c.b16 %v331, %v325
  %v344 = vpack.c.b16 %v332, %v326
  %v345 = vpack.c.b16 %v333, %v327
  %v346 = vpack.c.b16 %v334, %v328
  %v347 = vpack.c.b16 %v335, %v329
  %vm360 = vcmask 261120
  %v362 = vsel %vm360, %v263, 0
  %v365 = vsel %vm360, %v264, 0
  %v368 = vsel %vm360, %v265, 0
  %v371 = vsel %vm360, %v266, 0
  %v374 = vsel %vm360, %v267, 0
  %v377 = vsel %vm360, %v268, 0
  %v380 = vsel %vm360, %v269, 0
  %v383 = vsel %vm360, %v270, 0
  %v386 = vsel %vm360, %v271, 0
  %v389 = vsel %vm360, %v272, 0
  %v392 = vsel %vm360, %v273, 0
  %v395 = vsel %vm360, %v274, 0
  %v398 = vsel %vm360, %v275, 0
  %v401 = vsel %vm360, %v276, 0
  %v404 = vsel %vm360, %v277, 0
  %v407 = vsel %vm360, %v278, 0
  %v410 = vsel %vm360, %v279, 0
  %v413 = vsel %vm360, %v280, 0
  %v416 = vsel %vm360, %v281, 0
  %v419 = vsel %vm360, %v282, 0
  %v422 = vsel %vm360, %v283, 0
  %v425 = vsel %vm360, %v284, 0
  %v428 = vsel %vm360, %v285, 0
  %v431 = vsel %vm360, %v286, 0
  %v434 = vsel %vm360, %v287, 0
  %v437 = vsel %vm360, %v288, 0
  %v440 = vsel %vm360, %v289, 0
  %v443 = vsel %vm360, %v290, 0
  %v446 = vsel %vm360, %v291, 0
  %v449 = vsel %vm360, %v292, 0
  %v452 = vsel %vm360, %v293, 0
  %v455 = vsel %vm360, %v294, 0
  %v458 = vsel %vm360, %v295, 0
  %v461 = vsel %vm360, %v296, 0
  %v464 = vsel %vm360, %v297, 0
  %v467 = vsel %vm360, %v298, 0
  %v470 = vsel %vm360, %v299, 0
  %472 = vmatpush.bf16.msra.mxu0 0
  %473 = vmatpush.bf16.msra.mxu0 0
  %474 = vmatpush.bf16.msra.mxu0 0
  %475 = vmatpush.bf16.msra.mxu0 0
  %476 = vmatpush.bf16.msra.mxu0 0
  %477 = vmatpush.bf16.msra.mxu0 0
  %478 = vmatpush.bf16.msra.mxu0 %v342
  %479 = vmatpush.bf16.msra.mxu0 %v336
  %480 = vmatmul.bf16.gmra.mxu0 %v362
  %v481 = vpop.f32.mrf.mxu0
  %v482 = vadd.f32 %v103, %v481
  %v483 = vpop.f32.mrf.mxu0
  %v484 = vadd.f32 %v103, %v483
  %485 = vmatmul.bf16.gmra.mxu0 %v365
  %v486 = vpop.f32.mrf.mxu0
  %v487 = vadd.f32 %v103, %v486
  %v488 = vpop.f32.mrf.mxu0
  %v489 = vadd.f32 %v103, %v488
  %490 = vmatmul.bf16.gmra.mxu0 %v368
  %v491 = vpop.f32.mrf.mxu0
  %v492 = vadd.f32 %v103, %v491
  %v493 = vpop.f32.mrf.mxu0
  %v494 = vadd.f32 %v103, %v493
  %495 = vmatmul.bf16.gmra.mxu0 %v371
  %v496 = vpop.f32.mrf.mxu0
  %v497 = vadd.f32 %v103, %v496
  %v498 = vpop.f32.mrf.mxu0
  %v499 = vadd.f32 %v103, %v498
  %500 = vmatmul.bf16.gmra.mxu0 %v374
  %v501 = vpop.f32.mrf.mxu0
  %v502 = vadd.f32 %v103, %v501
  %v503 = vpop.f32.mrf.mxu0
  %v504 = vadd.f32 %v103, %v503
  %505 = vmatmul.bf16.gmra.mxu0 %v377
  %v506 = vpop.f32.mrf.mxu0
  %v507 = vadd.f32 %v103, %v506
  %v508 = vpop.f32.mrf.mxu0
  %v509 = vadd.f32 %v103, %v508
  %510 = vmatmul.bf16.gmra.mxu0 %v380
  %v511 = vpop.f32.mrf.mxu0
  %v512 = vadd.f32 %v103, %v511
  %v513 = vpop.f32.mrf.mxu0
  %v514 = vadd.f32 %v103, %v513
  %515 = vmatmul.bf16.gmra.mxu0 %v383
  %v516 = vpop.f32.mrf.mxu0
  %v517 = vadd.f32 %v103, %v516
  %v518 = vpop.f32.mrf.mxu0
  %v519 = vadd.f32 %v103, %v518
  %520 = vmatmul.bf16.gmra.mxu0 %v386
  %v521 = vpop.f32.mrf.mxu0
  %v522 = vadd.f32 %v103, %v521
  %v523 = vpop.f32.mrf.mxu0
  %v524 = vadd.f32 %v103, %v523
  %525 = vmatmul.bf16.gmra.mxu0 %v389
  %v526 = vpop.f32.mrf.mxu0
  %v527 = vadd.f32 %v103, %v526
  %v528 = vpop.f32.mrf.mxu0
  %v529 = vadd.f32 %v103, %v528
  %530 = vmatmul.bf16.gmra.mxu0 %v392
  %v531 = vpop.f32.mrf.mxu0
  %v532 = vadd.f32 %v103, %v531
  %v533 = vpop.f32.mrf.mxu0
  %v534 = vadd.f32 %v103, %v533
  %535 = vmatmul.bf16.gmra.mxu0 %v395
  %v536 = vpop.f32.mrf.mxu0
  %v537 = vadd.f32 %v103, %v536
  %v538 = vpop.f32.mrf.mxu0
  %v539 = vadd.f32 %v103, %v538
  %540 = vmatmul.bf16.gmra.mxu0 %v398
  %v541 = vpop.f32.mrf.mxu0
  %v542 = vadd.f32 %v103, %v541
  %v543 = vpop.f32.mrf.mxu0
  %v544 = vadd.f32 %v103, %v543
  %545 = vmatmul.bf16.gmra.mxu0 %v401
  %v546 = vpop.f32.mrf.mxu0
  %v547 = vadd.f32 %v103, %v546
  %v548 = vpop.f32.mrf.mxu0
  %v549 = vadd.f32 %v103, %v548
  %550 = vmatmul.bf16.gmra.mxu0 %v404
  %v551 = vpop.f32.mrf.mxu0
  %v552 = vadd.f32 %v103, %v551
  %v553 = vpop.f32.mrf.mxu0
  %v554 = vadd.f32 %v103, %v553
  %555 = vmatmul.bf16.gmra.mxu0 %v407
  %v556 = vpop.f32.mrf.mxu0
  %v557 = vadd.f32 %v103, %v556
  %v558 = vpop.f32.mrf.mxu0
  %v559 = vadd.f32 %v103, %v558
  %560 = vmatmul.bf16.gmra.mxu0 %v410
  %v561 = vpop.f32.mrf.mxu0
  %v562 = vadd.f32 %v103, %v561
  %v563 = vpop.f32.mrf.mxu0
  %v564 = vadd.f32 %v103, %v563
  %565 = vmatmul.bf16.gmra.mxu0 %v413
  %v566 = vpop.f32.mrf.mxu0
  %v567 = vadd.f32 %v103, %v566
  %v568 = vpop.f32.mrf.mxu0
  %v569 = vadd.f32 %v103, %v568
  %570 = vmatmul.bf16.gmra.mxu0 %v416
  %v571 = vpop.f32.mrf.mxu0
  %v572 = vadd.f32 %v103, %v571
  %v573 = vpop.f32.mrf.mxu0
  %v574 = vadd.f32 %v103, %v573
  %575 = vmatmul.bf16.gmra.mxu0 %v419
  %v576 = vpop.f32.mrf.mxu0
  %v577 = vadd.f32 %v103, %v576
  %v578 = vpop.f32.mrf.mxu0
  %v579 = vadd.f32 %v103, %v578
  %580 = vmatmul.bf16.gmra.mxu0 %v422
  %v581 = vpop.f32.mrf.mxu0
  %v582 = vadd.f32 %v103, %v581
  %v583 = vpop.f32.mrf.mxu0
  %v584 = vadd.f32 %v103, %v583
  %585 = vmatmul.bf16.gmra.mxu0 %v425
  %v586 = vpop.f32.mrf.mxu0
  %v587 = vadd.f32 %v103, %v586
  %v588 = vpop.f32.mrf.mxu0
  %v589 = vadd.f32 %v103, %v588
  %590 = vmatmul.bf16.gmra.mxu0 %v428
  %v591 = vpop.f32.mrf.mxu0
  %v592 = vadd.f32 %v103, %v591
  %v593 = vpop.f32.mrf.mxu0
  %v594 = vadd.f32 %v103, %v593
  %595 = vmatmul.bf16.gmra.mxu0 %v431
  %v596 = vpop.f32.mrf.mxu0
  %v597 = vadd.f32 %v103, %v596
  %v598 = vpop.f32.mrf.mxu0
  %v599 = vadd.f32 %v103, %v598
  %600 = vmatmul.bf16.gmra.mxu0 %v434
  %v601 = vpop.f32.mrf.mxu0
  %v602 = vadd.f32 %v103, %v601
  %v603 = vpop.f32.mrf.mxu0
  %v604 = vadd.f32 %v103, %v603
  %605 = vmatmul.bf16.gmra.mxu0 %v437
  %v606 = vpop.f32.mrf.mxu0
  %v607 = vadd.f32 %v103, %v606
  %v608 = vpop.f32.mrf.mxu0
  %v609 = vadd.f32 %v103, %v608
  %610 = vmatmul.bf16.gmra.mxu0 %v440
  %v611 = vpop.f32.mrf.mxu0
  %v612 = vadd.f32 %v103, %v611
  %v613 = vpop.f32.mrf.mxu0
  %v614 = vadd.f32 %v103, %v613
  %615 = vmatmul.bf16.gmra.mxu0 %v443
  %v616 = vpop.f32.mrf.mxu0
  %v617 = vadd.f32 %v103, %v616
  %v618 = vpop.f32.mrf.mxu0
  %v619 = vadd.f32 %v103, %v618
  %620 = vmatmul.bf16.gmra.mxu0 %v446
  %v621 = vpop.f32.mrf.mxu0
  %v622 = vadd.f32 %v103, %v621
  %v623 = vpop.f32.mrf.mxu0
  %v624 = vadd.f32 %v103, %v623
  %625 = vmatmul.bf16.gmra.mxu0 %v449
  %v626 = vpop.f32.mrf.mxu0
  %v627 = vadd.f32 %v103, %v626
  %v628 = vpop.f32.mrf.mxu0
  %v629 = vadd.f32 %v103, %v628
  %630 = vmatmul.bf16.gmra.mxu0 %v452
  %v631 = vpop.f32.mrf.mxu0
  %v632 = vadd.f32 %v103, %v631
  %v633 = vpop.f32.mrf.mxu0
  %v634 = vadd.f32 %v103, %v633
  %635 = vmatmul.bf16.gmra.mxu0 %v455
  %v636 = vpop.f32.mrf.mxu0
  %v637 = vadd.f32 %v103, %v636
  %v638 = vpop.f32.mrf.mxu0
  %v639 = vadd.f32 %v103, %v638
  %640 = vmatmul.bf16.gmra.mxu0 %v458
  %v641 = vpop.f32.mrf.mxu0
  %v642 = vadd.f32 %v103, %v641
  %v643 = vpop.f32.mrf.mxu0
  %v644 = vadd.f32 %v103, %v643
  %645 = vmatmul.bf16.gmra.mxu0 %v461
  %v646 = vpop.f32.mrf.mxu0
  %v647 = vadd.f32 %v103, %v646
  %v648 = vpop.f32.mrf.mxu0
  %v649 = vadd.f32 %v103, %v648
  %650 = vmatmul.bf16.gmra.mxu0 %v464
  %v651 = vpop.f32.mrf.mxu0
  %v652 = vadd.f32 %v103, %v651
  %v653 = vpop.f32.mrf.mxu0
  %v654 = vadd.f32 %v103, %v653
  %655 = vmatmul.bf16.gmra.mxu0 %v467
  %v656 = vpop.f32.mrf.mxu0
  %v657 = vadd.f32 %v103, %v656
  %v658 = vpop.f32.mrf.mxu0
  %v659 = vadd.f32 %v103, %v658
  %660 = vmatmul.bf16.gmra.mxu0 %v470
  %v661 = vpop.f32.mrf.mxu0
  %v662 = vadd.f32 %v103, %v661
  %v663 = vpop.f32.mrf.mxu0
  %v664 = vadd.f32 %v103, %v663
  %665 = vdwg.mxu0
  %666 = vmatpush.bf16.msra.mxu0 0
  %667 = vmatpush.bf16.msra.mxu0 0
  %668 = vmatpush.bf16.msra.mxu0 0
  %669 = vmatpush.bf16.msra.mxu0 0
  %670 = vmatpush.bf16.msra.mxu0 0
  %671 = vmatpush.bf16.msra.mxu0 0
  %672 = vmatpush.bf16.msra.mxu0 %v343
  %673 = vmatpush.bf16.msra.mxu0 %v337
  %674 = vmatmul.bf16.gmra.mxu0 %v362
  %v675 = vpop.f32.mrf.mxu0
  %v676 = vadd.f32 %v104, %v675
  %v677 = vpop.f32.mrf.mxu0
  %v678 = vadd.f32 %v104, %v677
  %679 = vmatmul.bf16.gmra.mxu0 %v365
  %v680 = vpop.f32.mrf.mxu0
  %v681 = vadd.f32 %v104, %v680
  %v682 = vpop.f32.mrf.mxu0
  %v683 = vadd.f32 %v104, %v682
  %684 = vmatmul.bf16.gmra.mxu0 %v368
  %v685 = vpop.f32.mrf.mxu0
  %v686 = vadd.f32 %v104, %v685
  %v687 = vpop.f32.mrf.mxu0
  %v688 = vadd.f32 %v104, %v687
  %689 = vmatmul.bf16.gmra.mxu0 %v371
  %v690 = vpop.f32.mrf.mxu0
  %v691 = vadd.f32 %v104, %v690
  %v692 = vpop.f32.mrf.mxu0
  %v693 = vadd.f32 %v104, %v692
  %694 = vmatmul.bf16.gmra.mxu0 %v374
  %v695 = vpop.f32.mrf.mxu0
  %v696 = vadd.f32 %v104, %v695
  %v697 = vpop.f32.mrf.mxu0
  %v698 = vadd.f32 %v104, %v697
  %699 = vmatmul.bf16.gmra.mxu0 %v377
  %v700 = vpop.f32.mrf.mxu0
  %v701 = vadd.f32 %v104, %v700
  %v702 = vpop.f32.mrf.mxu0
  %v703 = vadd.f32 %v104, %v702
  %704 = vmatmul.bf16.gmra.mxu0 %v380
  %v705 = vpop.f32.mrf.mxu0
  %v706 = vadd.f32 %v104, %v705
  %v707 = vpop.f32.mrf.mxu0
  %v708 = vadd.f32 %v104, %v707
  %709 = vmatmul.bf16.gmra.mxu0 %v383
  %v710 = vpop.f32.mrf.mxu0
  %v711 = vadd.f32 %v104, %v710
  %v712 = vpop.f32.mrf.mxu0
  %v713 = vadd.f32 %v104, %v712
  %714 = vmatmul.bf16.gmra.mxu0 %v386
  %v715 = vpop.f32.mrf.mxu0
  %v716 = vadd.f32 %v104, %v715
  %v717 = vpop.f32.mrf.mxu0
  %v718 = vadd.f32 %v104, %v717
  %719 = vmatmul.bf16.gmra.mxu0 %v389
  %v720 = vpop.f32.mrf.mxu0
  %v721 = vadd.f32 %v104, %v720
  %v722 = vpop.f32.mrf.mxu0
  %v723 = vadd.f32 %v104, %v722
  %724 = vmatmul.bf16.gmra.mxu0 %v392
  %v725 = vpop.f32.mrf.mxu0
  %v726 = vadd.f32 %v104, %v725
  %v727 = vpop.f32.mrf.mxu0
  %v728 = vadd.f32 %v104, %v727
  %729 = vmatmul.bf16.gmra.mxu0 %v395
  %v730 = vpop.f32.mrf.mxu0
  %v731 = vadd.f32 %v104, %v730
  %v732 = vpop.f32.mrf.mxu0
  %v733 = vadd.f32 %v104, %v732
  %734 = vmatmul.bf16.gmra.mxu0 %v398
  %v735 = vpop.f32.mrf.mxu0
  %v736 = vadd.f32 %v104, %v735
  %v737 = vpop.f32.mrf.mxu0
  %v738 = vadd.f32 %v104, %v737
  %739 = vmatmul.bf16.gmra.mxu0 %v401
  %v740 = vpop.f32.mrf.mxu0
  %v741 = vadd.f32 %v104, %v740
  %v742 = vpop.f32.mrf.mxu0
  %v743 = vadd.f32 %v104, %v742
  %744 = vmatmul.bf16.gmra.mxu0 %v404
  %v745 = vpop.f32.mrf.mxu0
  %v746 = vadd.f32 %v104, %v745
  %v747 = vpop.f32.mrf.mxu0
  %v748 = vadd.f32 %v104, %v747
  %749 = vmatmul.bf16.gmra.mxu0 %v407
  %v750 = vpop.f32.mrf.mxu0
  %v751 = vadd.f32 %v104, %v750
  %v752 = vpop.f32.mrf.mxu0
  %v753 = vadd.f32 %v104, %v752
  %754 = vmatmul.bf16.gmra.mxu0 %v410
  %v755 = vpop.f32.mrf.mxu0
  %v756 = vadd.f32 %v104, %v755
  %v757 = vpop.f32.mrf.mxu0
  %v758 = vadd.f32 %v104, %v757
  %759 = vmatmul.bf16.gmra.mxu0 %v413
  %v760 = vpop.f32.mrf.mxu0
  %v761 = vadd.f32 %v104, %v760
  %v762 = vpop.f32.mrf.mxu0
  %v763 = vadd.f32 %v104, %v762
  %764 = vmatmul.bf16.gmra.mxu0 %v416
  %v765 = vpop.f32.mrf.mxu0
  %v766 = vadd.f32 %v104, %v765
  %v767 = vpop.f32.mrf.mxu0
  %v768 = vadd.f32 %v104, %v767
  %769 = vmatmul.bf16.gmra.mxu0 %v419
  %v770 = vpop.f32.mrf.mxu0
  %v771 = vadd.f32 %v104, %v770
  %v772 = vpop.f32.mrf.mxu0
  %v773 = vadd.f32 %v104, %v772
  %774 = vmatmul.bf16.gmra.mxu0 %v422
  %v775 = vpop.f32.mrf.mxu0
  %v776 = vadd.f32 %v104, %v775
  %v777 = vpop.f32.mrf.mxu0
  %v778 = vadd.f32 %v104, %v777
  %779 = vmatmul.bf16.gmra.mxu0 %v425
  %v780 = vpop.f32.mrf.mxu0
  %v781 = vadd.f32 %v104, %v780
  %v782 = vpop.f32.mrf.mxu0
  %v783 = vadd.f32 %v104, %v782
  %784 = vmatmul.bf16.gmra.mxu0 %v428
  %v785 = vpop.f32.mrf.mxu0
  %v786 = vadd.f32 %v104, %v785
  %v787 = vpop.f32.mrf.mxu0
  %v788 = vadd.f32 %v104, %v787
  %789 = vmatmul.bf16.gmra.mxu0 %v431
  %v790 = vpop.f32.mrf.mxu0
  %v791 = vadd.f32 %v104, %v790
  %v792 = vpop.f32.mrf.mxu0
  %v793 = vadd.f32 %v104, %v792
  %794 = vmatmul.bf16.gmra.mxu0 %v434
  %v795 = vpop.f32.mrf.mxu0
  %v796 = vadd.f32 %v104, %v795
  %v797 = vpop.f32.mrf.mxu0
  %v798 = vadd.f32 %v104, %v797
  %799 = vmatmul.bf16.gmra.mxu0 %v437
  %v800 = vpop.f32.mrf.mxu0
  %v801 = vadd.f32 %v104, %v800
  %v802 = vpop.f32.mrf.mxu0
  %v803 = vadd.f32 %v104, %v802
  %804 = vmatmul.bf16.gmra.mxu0 %v440
  %v805 = vpop.f32.mrf.mxu0
  %v806 = vadd.f32 %v104, %v805
  %v807 = vpop.f32.mrf.mxu0
  %v808 = vadd.f32 %v104, %v807
  %809 = vmatmul.bf16.gmra.mxu0 %v443
  %v810 = vpop.f32.mrf.mxu0
  %v811 = vadd.f32 %v104, %v810
  %v812 = vpop.f32.mrf.mxu0
  %v813 = vadd.f32 %v104, %v812
  %814 = vmatmul.bf16.gmra.mxu0 %v446
  %v815 = vpop.f32.mrf.mxu0
  %v816 = vadd.f32 %v104, %v815
  %v817 = vpop.f32.mrf.mxu0
  %v818 = vadd.f32 %v104, %v817
  %819 = vmatmul.bf16.gmra.mxu0 %v449
  %v820 = vpop.f32.mrf.mxu0
  %v821 = vadd.f32 %v104, %v820
  %v822 = vpop.f32.mrf.mxu0
  %v823 = vadd.f32 %v104, %v822
  %824 = vmatmul.bf16.gmra.mxu0 %v452
  %v825 = vpop.f32.mrf.mxu0
  %v826 = vadd.f32 %v104, %v825
  %v827 = vpop.f32.mrf.mxu0
  %v828 = vadd.f32 %v104, %v827
  %829 = vmatmul.bf16.gmra.mxu0 %v455
  %v830 = vpop.f32.mrf.mxu0
  %v831 = vadd.f32 %v104, %v830
  %v832 = vpop.f32.mrf.mxu0
  %v833 = vadd.f32 %v104, %v832
  %834 = vmatmul.bf16.gmra.mxu0 %v458
  %v835 = vpop.f32.mrf.mxu0
  %v836 = vadd.f32 %v104, %v835
  %v837 = vpop.f32.mrf.mxu0
  %v838 = vadd.f32 %v104, %v837
  %839 = vmatmul.bf16.gmra.mxu0 %v461
  %v840 = vpop.f32.mrf.mxu0
  %v841 = vadd.f32 %v104, %v840
  %v842 = vpop.f32.mrf.mxu0
  %v843 = vadd.f32 %v104, %v842
  %844 = vmatmul.bf16.gmra.mxu0 %v464
  %v845 = vpop.f32.mrf.mxu0
  %v846 = vadd.f32 %v104, %v845
  %v847 = vpop.f32.mrf.mxu0
  %v848 = vadd.f32 %v104, %v847
  %849 = vmatmul.bf16.gmra.mxu0 %v467
  %v850 = vpop.f32.mrf.mxu0
  %v851 = vadd.f32 %v104, %v850
  %v852 = vpop.f32.mrf.mxu0
  %v853 = vadd.f32 %v104, %v852
  %854 = vmatmul.bf16.gmra.mxu0 %v470
  %v855 = vpop.f32.mrf.mxu0
  %v856 = vadd.f32 %v104, %v855
  %v857 = vpop.f32.mrf.mxu0
  %v858 = vadd.f32 %v104, %v857
  %859 = vdwg.mxu0
  %860 = vmatpush.bf16.msra.mxu0 0
  %861 = vmatpush.bf16.msra.mxu0 0
  %862 = vmatpush.bf16.msra.mxu0 0
  %863 = vmatpush.bf16.msra.mxu0 0
  %864 = vmatpush.bf16.msra.mxu0 0
  %865 = vmatpush.bf16.msra.mxu0 0
  %866 = vmatpush.bf16.msra.mxu0 %v344
  %867 = vmatpush.bf16.msra.mxu0 %v338
  %868 = vmatmul.bf16.gmra.mxu0 %v362
  %v869 = vpop.f32.mrf.mxu0
  %v870 = vadd.f32 %v105, %v869
  %v871 = vpop.f32.mrf.mxu0
  %v872 = vadd.f32 %v105, %v871
  %873 = vmatmul.bf16.gmra.mxu0 %v365
  %v874 = vpop.f32.mrf.mxu0
  %v875 = vadd.f32 %v105, %v874
  %v876 = vpop.f32.mrf.mxu0
  %v877 = vadd.f32 %v105, %v876
  %878 = vmatmul.bf16.gmra.mxu0 %v368
  %v879 = vpop.f32.mrf.mxu0
  %v880 = vadd.f32 %v105, %v879
  %v881 = vpop.f32.mrf.mxu0
  %v882 = vadd.f32 %v105, %v881
  %883 = vmatmul.bf16.gmra.mxu0 %v371
  %v884 = vpop.f32.mrf.mxu0
  %v885 = vadd.f32 %v105, %v884
  %v886 = vpop.f32.mrf.mxu0
  %v887 = vadd.f32 %v105, %v886
  %888 = vmatmul.bf16.gmra.mxu0 %v374
  %v889 = vpop.f32.mrf.mxu0
  %v890 = vadd.f32 %v105, %v889
  %v891 = vpop.f32.mrf.mxu0
  %v892 = vadd.f32 %v105, %v891
  %893 = vmatmul.bf16.gmra.mxu0 %v377
  %v894 = vpop.f32.mrf.mxu0
  %v895 = vadd.f32 %v105, %v894
  %v896 = vpop.f32.mrf.mxu0
  %v897 = vadd.f32 %v105, %v896
  %898 = vmatmul.bf16.gmra.mxu0 %v380
  %v899 = vpop.f32.mrf.mxu0
  %v900 = vadd.f32 %v105, %v899
  %v901 = vpop.f32.mrf.mxu0
  %v902 = vadd.f32 %v105, %v901
  %903 = vmatmul.bf16.gmra.mxu0 %v383
  %v904 = vpop.f32.mrf.mxu0
  %v905 = vadd.f32 %v105, %v904
  %v906 = vpop.f32.mrf.mxu0
  %v907 = vadd.f32 %v105, %v906
  %908 = vmatmul.bf16.gmra.mxu0 %v386
  %v909 = vpop.f32.mrf.mxu0
  %v910 = vadd.f32 %v105, %v909
  %v911 = vpop.f32.mrf.mxu0
  %v912 = vadd.f32 %v105, %v911
  %913 = vmatmul.bf16.gmra.mxu0 %v389
  %v914 = vpop.f32.mrf.mxu0
  %v915 = vadd.f32 %v105, %v914
  %v916 = vpop.f32.mrf.mxu0
  %v917 = vadd.f32 %v105, %v916
  %918 = vmatmul.bf16.gmra.mxu0 %v392
  %v919 = vpop.f32.mrf.mxu0
  %v920 = vadd.f32 %v105, %v919
  %v921 = vpop.f32.mrf.mxu0
  %v922 = vadd.f32 %v105, %v921
  %923 = vmatmul.bf16.gmra.mxu0 %v395
  %v924 = vpop.f32.mrf.mxu0
  %v925 = vadd.f32 %v105, %v924
  %v926 = vpop.f32.mrf.mxu0
  %v927 = vadd.f32 %v105, %v926
  %928 = vmatmul.bf16.gmra.mxu0 %v398
  %v929 = vpop.f32.mrf.mxu0
  %v930 = vadd.f32 %v105, %v929
  %v931 = vpop.f32.mrf.mxu0
  %v932 = vadd.f32 %v105, %v931
  %933 = vmatmul.bf16.gmra.mxu0 %v401
  %v934 = vpop.f32.mrf.mxu0
  %v935 = vadd.f32 %v105, %v934
  %v936 = vpop.f32.mrf.mxu0
  %v937 = vadd.f32 %v105, %v936
  %938 = vmatmul.bf16.gmra.mxu0 %v404
  %v939 = vpop.f32.mrf.mxu0
  %v940 = vadd.f32 %v105, %v939
  %v941 = vpop.f32.mrf.mxu0
  %v942 = vadd.f32 %v105, %v941
  %943 = vmatmul.bf16.gmra.mxu0 %v407
  %v944 = vpop.f32.mrf.mxu0
  %v945 = vadd.f32 %v105, %v944
  %v946 = vpop.f32.mrf.mxu0
  %v947 = vadd.f32 %v105, %v946
  %948 = vmatmul.bf16.gmra.mxu0 %v410
  %v949 = vpop.f32.mrf.mxu0
  %v950 = vadd.f32 %v105, %v949
  %v951 = vpop.f32.mrf.mxu0
  %v952 = vadd.f32 %v105, %v951
  %953 = vmatmul.bf16.gmra.mxu0 %v413
  %v954 = vpop.f32.mrf.mxu0
  %v955 = vadd.f32 %v105, %v954
  %v956 = vpop.f32.mrf.mxu0
  %v957 = vadd.f32 %v105, %v956
  %958 = vmatmul.bf16.gmra.mxu0 %v416
  %v959 = vpop.f32.mrf.mxu0
  %v960 = vadd.f32 %v105, %v959
  %v961 = vpop.f32.mrf.mxu0
  %v962 = vadd.f32 %v105, %v961
  %963 = vmatmul.bf16.gmra.mxu0 %v419
  %v964 = vpop.f32.mrf.mxu0
  %v965 = vadd.f32 %v105, %v964
  %v966 = vpop.f32.mrf.mxu0
  %v967 = vadd.f32 %v105, %v966
  %968 = vmatmul.bf16.gmra.mxu0 %v422
  %v969 = vpop.f32.mrf.mxu0
  %v970 = vadd.f32 %v105, %v969
  %v971 = vpop.f32.mrf.mxu0
  %v972 = vadd.f32 %v105, %v971
  %973 = vmatmul.bf16.gmra.mxu0 %v425
  %v974 = vpop.f32.mrf.mxu0
  %v975 = vadd.f32 %v105, %v974
  %v976 = vpop.f32.mrf.mxu0
  %v977 = vadd.f32 %v105, %v976
  %978 = vmatmul.bf16.gmra.mxu0 %v428
  %v979 = vpop.f32.mrf.mxu0
  %v980 = vadd.f32 %v105, %v979
  %v981 = vpop.f32.mrf.mxu0
  %v982 = vadd.f32 %v105, %v981
  %983 = vmatmul.bf16.gmra.mxu0 %v431
  %v984 = vpop.f32.mrf.mxu0
  %v985 = vadd.f32 %v105, %v984
  %v986 = vpop.f32.mrf.mxu0
  %v987 = vadd.f32 %v105, %v986
  %988 = vmatmul.bf16.gmra.mxu0 %v434
  %v989 = vpop.f32.mrf.mxu0
  %v990 = vadd.f32 %v105, %v989
  %v991 = vpop.f32.mrf.mxu0
  %v992 = vadd.f32 %v105, %v991
  %993 = vmatmul.bf16.gmra.mxu0 %v437
  %v994 = vpop.f32.mrf.mxu0
  %v995 = vadd.f32 %v105, %v994
  %v996 = vpop.f32.mrf.mxu0
  %v997 = vadd.f32 %v105, %v996
  %998 = vmatmul.bf16.gmra.mxu0 %v440
  %v999 = vpop.f32.mrf.mxu0
  %v1000 = vadd.f32 %v105, %v999
  %v1001 = vpop.f32.mrf.mxu0
  %v1002 = vadd.f32 %v105, %v1001
  %1003 = vmatmul.bf16.gmra.mxu0 %v443
  %v1004 = vpop.f32.mrf.mxu0
  %v1005 = vadd.f32 %v105, %v1004
  %v1006 = vpop.f32.mrf.mxu0
  %v1007 = vadd.f32 %v105, %v1006
  %1008 = vmatmul.bf16.gmra.mxu0 %v446
  %v1009 = vpop.f32.mrf.mxu0
  %v1010 = vadd.f32 %v105, %v1009
  %v1011 = vpop.f32.mrf.mxu0
  %v1012 = vadd.f32 %v105, %v1011
  %1013 = vmatmul.bf16.gmra.mxu0 %v449
  %v1014 = vpop.f32.mrf.mxu0
  %v1015 = vadd.f32 %v105, %v1014
  %v1016 = vpop.f32.mrf.mxu0
  %v1017 = vadd.f32 %v105, %v1016
  %1018 = vmatmul.bf16.gmra.mxu0 %v452
  %v1019 = vpop.f32.mrf.mxu0
  %v1020 = vadd.f32 %v105, %v1019
  %v1021 = vpop.f32.mrf.mxu0
  %v1022 = vadd.f32 %v105, %v1021
  %1023 = vmatmul.bf16.gmra.mxu0 %v455
  %v1024 = vpop.f32.mrf.mxu0
  %v1025 = vadd.f32 %v105, %v1024
  %v1026 = vpop.f32.mrf.mxu0
  %v1027 = vadd.f32 %v105, %v1026
  %1028 = vmatmul.bf16.gmra.mxu0 %v458
  %v1029 = vpop.f32.mrf.mxu0
  %v1030 = vadd.f32 %v105, %v1029
  %v1031 = vpop.f32.mrf.mxu0
  %v1032 = vadd.f32 %v105, %v1031
  %1033 = vmatmul.bf16.gmra.mxu0 %v461
  %v1034 = vpop.f32.mrf.mxu0
  %v1035 = vadd.f32 %v105, %v1034
  %v1036 = vpop.f32.mrf.mxu0
  %v1037 = vadd.f32 %v105, %v1036
  %1038 = vmatmul.bf16.gmra.mxu0 %v464
  %v1039 = vpop.f32.mrf.mxu0
  %v1040 = vadd.f32 %v105, %v1039
  %v1041 = vpop.f32.mrf.mxu0
  %v1042 = vadd.f32 %v105, %v1041
  %1043 = vmatmul.bf16.gmra.mxu0 %v467
  %v1044 = vpop.f32.mrf.mxu0
  %v1045 = vadd.f32 %v105, %v1044
  %v1046 = vpop.f32.mrf.mxu0
  %v1047 = vadd.f32 %v105, %v1046
  %1048 = vmatmul.bf16.gmra.mxu0 %v470
  %v1049 = vpop.f32.mrf.mxu0
  %v1050 = vadd.f32 %v105, %v1049
  %v1051 = vpop.f32.mrf.mxu0
  %v1052 = vadd.f32 %v105, %v1051
  %1053 = vdwg.mxu0
  %1054 = vmatpush.bf16.msra.mxu0 0
  %1055 = vmatpush.bf16.msra.mxu0 0
  %1056 = vmatpush.bf16.msra.mxu0 0
  %1057 = vmatpush.bf16.msra.mxu0 0
  %1058 = vmatpush.bf16.msra.mxu0 0
  %1059 = vmatpush.bf16.msra.mxu0 0
  %1060 = vmatpush.bf16.msra.mxu0 %v345
  %1061 = vmatpush.bf16.msra.mxu0 %v339
  %1062 = vmatmul.bf16.gmra.mxu0 %v362
  %v1063 = vpop.f32.mrf.mxu0
  %v1064 = vadd.f32 %v106, %v1063
  %v1065 = vpop.f32.mrf.mxu0
  %v1066 = vadd.f32 %v106, %v1065
  %1067 = vmatmul.bf16.gmra.mxu0 %v365
  %v1068 = vpop.f32.mrf.mxu0
  %v1069 = vadd.f32 %v106, %v1068
  %v1070 = vpop.f32.mrf.mxu0
  %v1071 = vadd.f32 %v106, %v1070
  %1072 = vmatmul.bf16.gmra.mxu0 %v368
  %v1073 = vpop.f32.mrf.mxu0
  %v1074 = vadd.f32 %v106, %v1073
  %v1075 = vpop.f32.mrf.mxu0
  %v1076 = vadd.f32 %v106, %v1075
  %1077 = vmatmul.bf16.gmra.mxu0 %v371
  %v1078 = vpop.f32.mrf.mxu0
  %v1079 = vadd.f32 %v106, %v1078
  %v1080 = vpop.f32.mrf.mxu0
  %v1081 = vadd.f32 %v106, %v1080
  %1082 = vmatmul.bf16.gmra.mxu0 %v374
  %v1083 = vpop.f32.mrf.mxu0
  %v1084 = vadd.f32 %v106, %v1083
  %v1085 = vpop.f32.mrf.mxu0
  %v1086 = vadd.f32 %v106, %v1085
  %1087 = vmatmul.bf16.gmra.mxu0 %v377
  %v1088 = vpop.f32.mrf.mxu0
  %v1089 = vadd.f32 %v106, %v1088
  %v1090 = vpop.f32.mrf.mxu0
  %v1091 = vadd.f32 %v106, %v1090
  %1092 = vmatmul.bf16.gmra.mxu0 %v380
  %v1093 = vpop.f32.mrf.mxu0
  %v1094 = vadd.f32 %v106, %v1093
  %v1095 = vpop.f32.mrf.mxu0
  %v1096 = vadd.f32 %v106, %v1095
  %1097 = vmatmul.bf16.gmra.mxu0 %v383
  %v1098 = vpop.f32.mrf.mxu0
  %v1099 = vadd.f32 %v106, %v1098
  %v1100 = vpop.f32.mrf.mxu0
  %v1101 = vadd.f32 %v106, %v1100
  %1102 = vmatmul.bf16.gmra.mxu0 %v386
  %v1103 = vpop.f32.mrf.mxu0
  %v1104 = vadd.f32 %v106, %v1103
  %v1105 = vpop.f32.mrf.mxu0
  %v1106 = vadd.f32 %v106, %v1105
  %1107 = vmatmul.bf16.gmra.mxu0 %v389
  %v1108 = vpop.f32.mrf.mxu0
  %v1109 = vadd.f32 %v106, %v1108
  %v1110 = vpop.f32.mrf.mxu0
  %v1111 = vadd.f32 %v106, %v1110
  %1112 = vmatmul.bf16.gmra.mxu0 %v392
  %v1113 = vpop.f32.mrf.mxu0
  %v1114 = vadd.f32 %v106, %v1113
  %v1115 = vpop.f32.mrf.mxu0
  %v1116 = vadd.f32 %v106, %v1115
  %1117 = vmatmul.bf16.gmra.mxu0 %v395
  %v1118 = vpop.f32.mrf.mxu0
  %v1119 = vadd.f32 %v106, %v1118
  %v1120 = vpop.f32.mrf.mxu0
  %v1121 = vadd.f32 %v106, %v1120
  %1122 = vmatmul.bf16.gmra.mxu0 %v398
  %v1123 = vpop.f32.mrf.mxu0
  %v1124 = vadd.f32 %v106, %v1123
  %v1125 = vpop.f32.mrf.mxu0
  %v1126 = vadd.f32 %v106, %v1125
  %1127 = vmatmul.bf16.gmra.mxu0 %v401
  %v1128 = vpop.f32.mrf.mxu0
  %v1129 = vadd.f32 %v106, %v1128
  %v1130 = vpop.f32.mrf.mxu0
  %v1131 = vadd.f32 %v106, %v1130
  %1132 = vmatmul.bf16.gmra.mxu0 %v404
  %v1133 = vpop.f32.mrf.mxu0
  %v1134 = vadd.f32 %v106, %v1133
  %v1135 = vpop.f32.mrf.mxu0
  %v1136 = vadd.f32 %v106, %v1135
  %1137 = vmatmul.bf16.gmra.mxu0 %v407
  %v1138 = vpop.f32.mrf.mxu0
  %v1139 = vadd.f32 %v106, %v1138
  %v1140 = vpop.f32.mrf.mxu0
  %v1141 = vadd.f32 %v106, %v1140
  %1142 = vmatmul.bf16.gmra.mxu0 %v410
  %v1143 = vpop.f32.mrf.mxu0
  %v1144 = vadd.f32 %v106, %v1143
  %v1145 = vpop.f32.mrf.mxu0
  %v1146 = vadd.f32 %v106, %v1145
  %1147 = vmatmul.bf16.gmra.mxu0 %v413
  %v1148 = vpop.f32.mrf.mxu0
  %v1149 = vadd.f32 %v106, %v1148
  %v1150 = vpop.f32.mrf.mxu0
  %v1151 = vadd.f32 %v106, %v1150
  %1152 = vmatmul.bf16.gmra.mxu0 %v416
  %v1153 = vpop.f32.mrf.mxu0
  %v1154 = vadd.f32 %v106, %v1153
  %v1155 = vpop.f32.mrf.mxu0
  %v1156 = vadd.f32 %v106, %v1155
  %1157 = vmatmul.bf16.gmra.mxu0 %v419
  %v1158 = vpop.f32.mrf.mxu0
  %v1159 = vadd.f32 %v106, %v1158
  %v1160 = vpop.f32.mrf.mxu0
  %v1161 = vadd.f32 %v106, %v1160
  %1162 = vmatmul.bf16.gmra.mxu0 %v422
  %v1163 = vpop.f32.mrf.mxu0
  %v1164 = vadd.f32 %v106, %v1163
  %v1165 = vpop.f32.mrf.mxu0
  %v1166 = vadd.f32 %v106, %v1165
  %1167 = vmatmul.bf16.gmra.mxu0 %v425
  %v1168 = vpop.f32.mrf.mxu0
  %v1169 = vadd.f32 %v106, %v1168
  %v1170 = vpop.f32.mrf.mxu0
  %v1171 = vadd.f32 %v106, %v1170
  %1172 = vmatmul.bf16.gmra.mxu0 %v428
  %v1173 = vpop.f32.mrf.mxu0
  %v1174 = vadd.f32 %v106, %v1173
  %v1175 = vpop.f32.mrf.mxu0
  %v1176 = vadd.f32 %v106, %v1175
  %1177 = vmatmul.bf16.gmra.mxu0 %v431
  %v1178 = vpop.f32.mrf.mxu0
  %v1179 = vadd.f32 %v106, %v1178
  %v1180 = vpop.f32.mrf.mxu0
  %v1181 = vadd.f32 %v106, %v1180
  %1182 = vmatmul.bf16.gmra.mxu0 %v434
  %v1183 = vpop.f32.mrf.mxu0
  %v1184 = vadd.f32 %v106, %v1183
  %v1185 = vpop.f32.mrf.mxu0
  %v1186 = vadd.f32 %v106, %v1185
  %1187 = vmatmul.bf16.gmra.mxu0 %v437
  %v1188 = vpop.f32.mrf.mxu0
  %v1189 = vadd.f32 %v106, %v1188
  %v1190 = vpop.f32.mrf.mxu0
  %v1191 = vadd.f32 %v106, %v1190
  %1192 = vmatmul.bf16.gmra.mxu0 %v440
  %v1193 = vpop.f32.mrf.mxu0
  %v1194 = vadd.f32 %v106, %v1193
  %v1195 = vpop.f32.mrf.mxu0
  %v1196 = vadd.f32 %v106, %v1195
  %1197 = vmatmul.bf16.gmra.mxu0 %v443
  %v1198 = vpop.f32.mrf.mxu0
  %v1199 = vadd.f32 %v106, %v1198
  %v1200 = vpop.f32.mrf.mxu0
  %v1201 = vadd.f32 %v106, %v1200
  %1202 = vmatmul.bf16.gmra.mxu0 %v446
  %v1203 = vpop.f32.mrf.mxu0
  %v1204 = vadd.f32 %v106, %v1203
  %v1205 = vpop.f32.mrf.mxu0
  %v1206 = vadd.f32 %v106, %v1205
  %1207 = vmatmul.bf16.gmra.mxu0 %v449
  %v1208 = vpop.f32.mrf.mxu0
  %v1209 = vadd.f32 %v106, %v1208
  %v1210 = vpop.f32.mrf.mxu0
  %v1211 = vadd.f32 %v106, %v1210
  %1212 = vmatmul.bf16.gmra.mxu0 %v452
  %v1213 = vpop.f32.mrf.mxu0
  %v1214 = vadd.f32 %v106, %v1213
  %v1215 = vpop.f32.mrf.mxu0
  %v1216 = vadd.f32 %v106, %v1215
  %1217 = vmatmul.bf16.gmra.mxu0 %v455
  %v1218 = vpop.f32.mrf.mxu0
  %v1219 = vadd.f32 %v106, %v1218
  %v1220 = vpop.f32.mrf.mxu0
  %v1221 = vadd.f32 %v106, %v1220
  %1222 = vmatmul.bf16.gmra.mxu0 %v458
  %v1223 = vpop.f32.mrf.mxu0
  %v1224 = vadd.f32 %v106, %v1223
  %v1225 = vpop.f32.mrf.mxu0
  %v1226 = vadd.f32 %v106, %v1225
  %1227 = vmatmul.bf16.gmra.mxu0 %v461
  %v1228 = vpop.f32.mrf.mxu0
  %v1229 = vadd.f32 %v106, %v1228
  %v1230 = vpop.f32.mrf.mxu0
  %v1231 = vadd.f32 %v106, %v1230
  %1232 = vmatmul.bf16.gmra.mxu0 %v464
  %v1233 = vpop.f32.mrf.mxu0
  %v1234 = vadd.f32 %v106, %v1233
  %v1235 = vpop.f32.mrf.mxu0
  %v1236 = vadd.f32 %v106, %v1235
  %1237 = vmatmul.bf16.gmra.mxu0 %v467
  %v1238 = vpop.f32.mrf.mxu0
  %v1239 = vadd.f32 %v106, %v1238
  %v1240 = vpop.f32.mrf.mxu0
  %v1241 = vadd.f32 %v106, %v1240
  %1242 = vmatmul.bf16.gmra.mxu0 %v470
  %v1243 = vpop.f32.mrf.mxu0
  %v1244 = vadd.f32 %v106, %v1243
  %v1245 = vpop.f32.mrf.mxu0
  %v1246 = vadd.f32 %v106, %v1245
  %1247 = vdwg.mxu0
  %1248 = vmatpush.bf16.msra.mxu0 0
  %1249 = vmatpush.bf16.msra.mxu0 0
  %1250 = vmatpush.bf16.msra.mxu0 0
  %1251 = vmatpush.bf16.msra.mxu0 0
  %1252 = vmatpush.bf16.msra.mxu0 0
  %1253 = vmatpush.bf16.msra.mxu0 0
  %1254 = vmatpush.bf16.msra.mxu0 %v346
  %1255 = vmatpush.bf16.msra.mxu0 %v340
  %1256 = vmatmul.bf16.gmra.mxu0 %v362
  %v1257 = vpop.f32.mrf.mxu0
  %v1258 = vadd.f32 %v107, %v1257
  %v1259 = vpop.f32.mrf.mxu0
  %v1260 = vadd.f32 %v107, %v1259
  %1261 = vmatmul.bf16.gmra.mxu0 %v365
  %v1262 = vpop.f32.mrf.mxu0
  %v1263 = vadd.f32 %v107, %v1262
  %v1264 = vpop.f32.mrf.mxu0
  %v1265 = vadd.f32 %v107, %v1264
  %1266 = vmatmul.bf16.gmra.mxu0 %v368
  %v1267 = vpop.f32.mrf.mxu0
  %v1268 = vadd.f32 %v107, %v1267
  %v1269 = vpop.f32.mrf.mxu0
  %v1270 = vadd.f32 %v107, %v1269
  %1271 = vmatmul.bf16.gmra.mxu0 %v371
  %v1272 = vpop.f32.mrf.mxu0
  %v1273 = vadd.f32 %v107, %v1272
  %v1274 = vpop.f32.mrf.mxu0
  %v1275 = vadd.f32 %v107, %v1274
  %1276 = vmatmul.bf16.gmra.mxu0 %v374
  %v1277 = vpop.f32.mrf.mxu0
  %v1278 = vadd.f32 %v107, %v1277
  %v1279 = vpop.f32.mrf.mxu0
  %v1280 = vadd.f32 %v107, %v1279
  %1281 = vmatmul.bf16.gmra.mxu0 %v377
  %v1282 = vpop.f32.mrf.mxu0
  %v1283 = vadd.f32 %v107, %v1282
  %v1284 = vpop.f32.mrf.mxu0
  %v1285 = vadd.f32 %v107, %v1284
  %1286 = vmatmul.bf16.gmra.mxu0 %v380
  %v1287 = vpop.f32.mrf.mxu0
  %v1288 = vadd.f32 %v107, %v1287
  %v1289 = vpop.f32.mrf.mxu0
  %v1290 = vadd.f32 %v107, %v1289
  %1291 = vmatmul.bf16.gmra.mxu0 %v383
  %v1292 = vpop.f32.mrf.mxu0
  %v1293 = vadd.f32 %v107, %v1292
  %v1294 = vpop.f32.mrf.mxu0
  %v1295 = vadd.f32 %v107, %v1294
  %1296 = vmatmul.bf16.gmra.mxu0 %v386
  %v1297 = vpop.f32.mrf.mxu0
  %v1298 = vadd.f32 %v107, %v1297
  %v1299 = vpop.f32.mrf.mxu0
  %v1300 = vadd.f32 %v107, %v1299
  %1301 = vmatmul.bf16.gmra.mxu0 %v389
  %v1302 = vpop.f32.mrf.mxu0
  %v1303 = vadd.f32 %v107, %v1302
  %v1304 = vpop.f32.mrf.mxu0
  %v1305 = vadd.f32 %v107, %v1304
  %1306 = vmatmul.bf16.gmra.mxu0 %v392
  %v1307 = vpop.f32.mrf.mxu0
  %v1308 = vadd.f32 %v107, %v1307
  %v1309 = vpop.f32.mrf.mxu0
  %v1310 = vadd.f32 %v107, %v1309
  %1311 = vmatmul.bf16.gmra.mxu0 %v395
  %v1312 = vpop.f32.mrf.mxu0
  %v1313 = vadd.f32 %v107, %v1312
  %v1314 = vpop.f32.mrf.mxu0
  %v1315 = vadd.f32 %v107, %v1314
  %1316 = vmatmul.bf16.gmra.mxu0 %v398
  %v1317 = vpop.f32.mrf.mxu0
  %v1318 = vadd.f32 %v107, %v1317
  %v1319 = vpop.f32.mrf.mxu0
  %v1320 = vadd.f32 %v107, %v1319
  %1321 = vmatmul.bf16.gmra.mxu0 %v401
  %v1322 = vpop.f32.mrf.mxu0
  %v1323 = vadd.f32 %v107, %v1322
  %v1324 = vpop.f32.mrf.mxu0
  %v1325 = vadd.f32 %v107, %v1324
  %1326 = vmatmul.bf16.gmra.mxu0 %v404
  %v1327 = vpop.f32.mrf.mxu0
  %v1328 = vadd.f32 %v107, %v1327
  %v1329 = vpop.f32.mrf.mxu0
  %v1330 = vadd.f32 %v107, %v1329
  %1331 = vmatmul.bf16.gmra.mxu0 %v407
  %v1332 = vpop.f32.mrf.mxu0
  %v1333 = vadd.f32 %v107, %v1332
  %v1334 = vpop.f32.mrf.mxu0
  %v1335 = vadd.f32 %v107, %v1334
  %1336 = vmatmul.bf16.gmra.mxu0 %v410
  %v1337 = vpop.f32.mrf.mxu0
  %v1338 = vadd.f32 %v107, %v1337
  %v1339 = vpop.f32.mrf.mxu0
  %v1340 = vadd.f32 %v107, %v1339
  %1341 = vmatmul.bf16.gmra.mxu0 %v413
  %v1342 = vpop.f32.mrf.mxu0
  %v1343 = vadd.f32 %v107, %v1342
  %v1344 = vpop.f32.mrf.mxu0
  %v1345 = vadd.f32 %v107, %v1344
  %1346 = vmatmul.bf16.gmra.mxu0 %v416
  %v1347 = vpop.f32.mrf.mxu0
  %v1348 = vadd.f32 %v107, %v1347
  %v1349 = vpop.f32.mrf.mxu0
  %v1350 = vadd.f32 %v107, %v1349
  %1351 = vmatmul.bf16.gmra.mxu0 %v419
  %v1352 = vpop.f32.mrf.mxu0
  %v1353 = vadd.f32 %v107, %v1352
  %v1354 = vpop.f32.mrf.mxu0
  %v1355 = vadd.f32 %v107, %v1354
  %1356 = vmatmul.bf16.gmra.mxu0 %v422
  %v1357 = vpop.f32.mrf.mxu0
  %v1358 = vadd.f32 %v107, %v1357
  %v1359 = vpop.f32.mrf.mxu0
  %v1360 = vadd.f32 %v107, %v1359
  %1361 = vmatmul.bf16.gmra.mxu0 %v425
  %v1362 = vpop.f32.mrf.mxu0
  %v1363 = vadd.f32 %v107, %v1362
  %v1364 = vpop.f32.mrf.mxu0
  %v1365 = vadd.f32 %v107, %v1364
  %1366 = vmatmul.bf16.gmra.mxu0 %v428
  %v1367 = vpop.f32.mrf.mxu0
  %v1368 = vadd.f32 %v107, %v1367
  %v1369 = vpop.f32.mrf.mxu0
  %v1370 = vadd.f32 %v107, %v1369
  %1371 = vmatmul.bf16.gmra.mxu0 %v431
  %v1372 = vpop.f32.mrf.mxu0
  %v1373 = vadd.f32 %v107, %v1372
  %v1374 = vpop.f32.mrf.mxu0
  %v1375 = vadd.f32 %v107, %v1374
  %1376 = vmatmul.bf16.gmra.mxu0 %v434
  %v1377 = vpop.f32.mrf.mxu0
  %v1378 = vadd.f32 %v107, %v1377
  %v1379 = vpop.f32.mrf.mxu0
  %v1380 = vadd.f32 %v107, %v1379
  %1381 = vmatmul.bf16.gmra.mxu0 %v437
  %v1382 = vpop.f32.mrf.mxu0
  %v1383 = vadd.f32 %v107, %v1382
  %v1384 = vpop.f32.mrf.mxu0
  %v1385 = vadd.f32 %v107, %v1384
  %1386 = vmatmul.bf16.gmra.mxu0 %v440
  %v1387 = vpop.f32.mrf.mxu0
  %v1388 = vadd.f32 %v107, %v1387
  %v1389 = vpop.f32.mrf.mxu0
  %v1390 = vadd.f32 %v107, %v1389
  %1391 = vmatmul.bf16.gmra.mxu0 %v443
  %v1392 = vpop.f32.mrf.mxu0
  %v1393 = vadd.f32 %v107, %v1392
  %v1394 = vpop.f32.mrf.mxu0
  %v1395 = vadd.f32 %v107, %v1394
  %1396 = vmatmul.bf16.gmra.mxu0 %v446
  %v1397 = vpop.f32.mrf.mxu0
  %v1398 = vadd.f32 %v107, %v1397
  %v1399 = vpop.f32.mrf.mxu0
  %v1400 = vadd.f32 %v107, %v1399
  %1401 = vmatmul.bf16.gmra.mxu0 %v449
  %v1402 = vpop.f32.mrf.mxu0
  %v1403 = vadd.f32 %v107, %v1402
  %v1404 = vpop.f32.mrf.mxu0
  %v1405 = vadd.f32 %v107, %v1404
  %1406 = vmatmul.bf16.gmra.mxu0 %v452
  %v1407 = vpop.f32.mrf.mxu0
  %v1408 = vadd.f32 %v107, %v1407
  %v1409 = vpop.f32.mrf.mxu0
  %v1410 = vadd.f32 %v107, %v1409
  %1411 = vmatmul.bf16.gmra.mxu0 %v455
  %v1412 = vpop.f32.mrf.mxu0
  %v1413 = vadd.f32 %v107, %v1412
  %v1414 = vpop.f32.mrf.mxu0
  %v1415 = vadd.f32 %v107, %v1414
  %1416 = vmatmul.bf16.gmra.mxu0 %v458
  %v1417 = vpop.f32.mrf.mxu0
  %v1418 = vadd.f32 %v107, %v1417
  %v1419 = vpop.f32.mrf.mxu0
  %v1420 = vadd.f32 %v107, %v1419
  %1421 = vmatmul.bf16.gmra.mxu0 %v461
  %v1422 = vpop.f32.mrf.mxu0
  %v1423 = vadd.f32 %v107, %v1422
  %v1424 = vpop.f32.mrf.mxu0
  %v1425 = vadd.f32 %v107, %v1424
  %1426 = vmatmul.bf16.gmra.mxu0 %v464
  %v1427 = vpop.f32.mrf.mxu0
  %v1428 = vadd.f32 %v107, %v1427
  %v1429 = vpop.f32.mrf.mxu0
  %v1430 = vadd.f32 %v107, %v1429
  %1431 = vmatmul.bf16.gmra.mxu0 %v467
  %v1432 = vpop.f32.mrf.mxu0
  %v1433 = vadd.f32 %v107, %v1432
  %v1434 = vpop.f32.mrf.mxu0
  %v1435 = vadd.f32 %v107, %v1434
  %1436 = vmatmul.bf16.gmra.mxu0 %v470
  %v1437 = vpop.f32.mrf.mxu0
  %v1438 = vadd.f32 %v107, %v1437
  %v1439 = vpop.f32.mrf.mxu0
  %v1440 = vadd.f32 %v107, %v1439
  %1441 = vdwg.mxu0
  %1442 = vmatpush.bf16.msra.mxu0 0
  %1443 = vmatpush.bf16.msra.mxu0 0
  %1444 = vmatpush.bf16.msra.mxu0 0
  %1445 = vmatpush.bf16.msra.mxu0 0
  %1446 = vmatpush.bf16.msra.mxu0 0
  %1447 = vmatpush.bf16.msra.mxu0 0
  %1448 = vmatpush.bf16.msra.mxu0 %v347
  %1449 = vmatpush.bf16.msra.mxu0 %v341
  %1450 = vmatmul.bf16.gmra.mxu0 %v362
  %v1451 = vpop.f32.mrf.mxu0
  %v1452 = vadd.f32 %v108, %v1451
  %v1453 = vpop.f32.mrf.mxu0
  %v1454 = vadd.f32 %v108, %v1453
  %1455 = vmatmul.bf16.gmra.mxu0 %v365
  %v1456 = vpop.f32.mrf.mxu0
  %v1457 = vadd.f32 %v108, %v1456
  %v1458 = vpop.f32.mrf.mxu0
  %v1459 = vadd.f32 %v108, %v1458
  %1460 = vmatmul.bf16.gmra.mxu0 %v368
  %v1461 = vpop.f32.mrf.mxu0
  %v1462 = vadd.f32 %v108, %v1461
  %v1463 = vpop.f32.mrf.mxu0
  %v1464 = vadd.f32 %v108, %v1463
  %1465 = vmatmul.bf16.gmra.mxu0 %v371
  %v1466 = vpop.f32.mrf.mxu0
  %v1467 = vadd.f32 %v108, %v1466
  %v1468 = vpop.f32.mrf.mxu0
  %v1469 = vadd.f32 %v108, %v1468
  %1470 = vmatmul.bf16.gmra.mxu0 %v374
  %v1471 = vpop.f32.mrf.mxu0
  %v1472 = vadd.f32 %v108, %v1471
  %v1473 = vpop.f32.mrf.mxu0
  %v1474 = vadd.f32 %v108, %v1473
  %1475 = vmatmul.bf16.gmra.mxu0 %v377
  %v1476 = vpop.f32.mrf.mxu0
  %v1477 = vadd.f32 %v108, %v1476
  %v1478 = vpop.f32.mrf.mxu0
  %v1479 = vadd.f32 %v108, %v1478
  %1480 = vmatmul.bf16.gmra.mxu0 %v380
  %v1481 = vpop.f32.mrf.mxu0
  %v1482 = vadd.f32 %v108, %v1481
  %v1483 = vpop.f32.mrf.mxu0
  %v1484 = vadd.f32 %v108, %v1483
  %1485 = vmatmul.bf16.gmra.mxu0 %v383
  %v1486 = vpop.f32.mrf.mxu0
  %v1487 = vadd.f32 %v108, %v1486
  %v1488 = vpop.f32.mrf.mxu0
  %v1489 = vadd.f32 %v108, %v1488
  %1490 = vmatmul.bf16.gmra.mxu0 %v386
  %v1491 = vpop.f32.mrf.mxu0
  %v1492 = vadd.f32 %v108, %v1491
  %v1493 = vpop.f32.mrf.mxu0
  %v1494 = vadd.f32 %v108, %v1493
  %1495 = vmatmul.bf16.gmra.mxu0 %v389
  %v1496 = vpop.f32.mrf.mxu0
  %v1497 = vadd.f32 %v108, %v1496
  %v1498 = vpop.f32.mrf.mxu0
  %v1499 = vadd.f32 %v108, %v1498
  %1500 = vmatmul.bf16.gmra.mxu0 %v392
  %v1501 = vpop.f32.mrf.mxu0
  %v1502 = vadd.f32 %v108, %v1501
  %v1503 = vpop.f32.mrf.mxu0
  %v1504 = vadd.f32 %v108, %v1503
  %1505 = vmatmul.bf16.gmra.mxu0 %v395
  %v1506 = vpop.f32.mrf.mxu0
  %v1507 = vadd.f32 %v108, %v1506
  %v1508 = vpop.f32.mrf.mxu0
  %v1509 = vadd.f32 %v108, %v1508
  %1510 = vmatmul.bf16.gmra.mxu0 %v398
  %v1511 = vpop.f32.mrf.mxu0
  %v1512 = vadd.f32 %v108, %v1511
  %v1513 = vpop.f32.mrf.mxu0
  %v1514 = vadd.f32 %v108, %v1513
  %1515 = vmatmul.bf16.gmra.mxu0 %v401
  %v1516 = vpop.f32.mrf.mxu0
  %v1517 = vadd.f32 %v108, %v1516
  %v1518 = vpop.f32.mrf.mxu0
  %v1519 = vadd.f32 %v108, %v1518
  %1520 = vmatmul.bf16.gmra.mxu0 %v404
  %v1521 = vpop.f32.mrf.mxu0
  %v1522 = vadd.f32 %v108, %v1521
  %v1523 = vpop.f32.mrf.mxu0
  %v1524 = vadd.f32 %v108, %v1523
  %1525 = vmatmul.bf16.gmra.mxu0 %v407
  %v1526 = vpop.f32.mrf.mxu0
  %v1527 = vadd.f32 %v108, %v1526
  %v1528 = vpop.f32.mrf.mxu0
  %v1529 = vadd.f32 %v108, %v1528
  %1530 = vmatmul.bf16.gmra.mxu0 %v410
  %v1531 = vpop.f32.mrf.mxu0
  %v1532 = vadd.f32 %v108, %v1531
  %v1533 = vpop.f32.mrf.mxu0
  %v1534 = vadd.f32 %v108, %v1533
  %1535 = vmatmul.bf16.gmra.mxu0 %v413
  %v1536 = vpop.f32.mrf.mxu0
  %v1537 = vadd.f32 %v108, %v1536
  %v1538 = vpop.f32.mrf.mxu0
  %v1539 = vadd.f32 %v108, %v1538
  %1540 = vmatmul.bf16.gmra.mxu0 %v416
  %v1541 = vpop.f32.mrf.mxu0
  %v1542 = vadd.f32 %v108, %v1541
  %v1543 = vpop.f32.mrf.mxu0
  %v1544 = vadd.f32 %v108, %v1543
  %1545 = vmatmul.bf16.gmra.mxu0 %v419
  %v1546 = vpop.f32.mrf.mxu0
  %v1547 = vadd.f32 %v108, %v1546
  %v1548 = vpop.f32.mrf.mxu0
  %v1549 = vadd.f32 %v108, %v1548
  %1550 = vmatmul.bf16.gmra.mxu0 %v422
  %v1551 = vpop.f32.mrf.mxu0
  %v1552 = vadd.f32 %v108, %v1551
  %v1553 = vpop.f32.mrf.mxu0
  %v1554 = vadd.f32 %v108, %v1553
  %1555 = vmatmul.bf16.gmra.mxu0 %v425
  %v1556 = vpop.f32.mrf.mxu0
  %v1557 = vadd.f32 %v108, %v1556
  %v1558 = vpop.f32.mrf.mxu0
  %v1559 = vadd.f32 %v108, %v1558
  %1560 = vmatmul.bf16.gmra.mxu0 %v428
  %v1561 = vpop.f32.mrf.mxu0
  %v1562 = vadd.f32 %v108, %v1561
  %v1563 = vpop.f32.mrf.mxu0
  %v1564 = vadd.f32 %v108, %v1563
  %1565 = vmatmul.bf16.gmra.mxu0 %v431
  %v1566 = vpop.f32.mrf.mxu0
  %v1567 = vadd.f32 %v108, %v1566
  %v1568 = vpop.f32.mrf.mxu0
  %v1569 = vadd.f32 %v108, %v1568
  %1570 = vmatmul.bf16.gmra.mxu0 %v434
  %v1571 = vpop.f32.mrf.mxu0
  %v1572 = vadd.f32 %v108, %v1571
  %v1573 = vpop.f32.mrf.mxu0
  %v1574 = vadd.f32 %v108, %v1573
  %1575 = vmatmul.bf16.gmra.mxu0 %v437
  %v1576 = vpop.f32.mrf.mxu0
  %v1577 = vadd.f32 %v108, %v1576
  %v1578 = vpop.f32.mrf.mxu0
  %v1579 = vadd.f32 %v108, %v1578
  %1580 = vmatmul.bf16.gmra.mxu0 %v440
  %v1581 = vpop.f32.mrf.mxu0
  %v1582 = vadd.f32 %v108, %v1581
  %v1583 = vpop.f32.mrf.mxu0
  %v1584 = vadd.f32 %v108, %v1583
  %1585 = vmatmul.bf16.gmra.mxu0 %v443
  %v1586 = vpop.f32.mrf.mxu0
  %v1587 = vadd.f32 %v108, %v1586
  %v1588 = vpop.f32.mrf.mxu0
  %v1589 = vadd.f32 %v108, %v1588
  %1590 = vmatmul.bf16.gmra.mxu0 %v446
  %v1591 = vpop.f32.mrf.mxu0
  %v1592 = vadd.f32 %v108, %v1591
  %v1593 = vpop.f32.mrf.mxu0
  %v1594 = vadd.f32 %v108, %v1593
  %1595 = vmatmul.bf16.gmra.mxu0 %v449
  %v1596 = vpop.f32.mrf.mxu0
  %v1597 = vadd.f32 %v108, %v1596
  %v1598 = vpop.f32.mrf.mxu0
  %v1599 = vadd.f32 %v108, %v1598
  %1600 = vmatmul.bf16.gmra.mxu0 %v452
  %v1601 = vpop.f32.mrf.mxu0
  %v1602 = vadd.f32 %v108, %v1601
  %v1603 = vpop.f32.mrf.mxu0
  %v1604 = vadd.f32 %v108, %v1603
  %1605 = vmatmul.bf16.gmra.mxu0 %v455
  %v1606 = vpop.f32.mrf.mxu0
  %v1607 = vadd.f32 %v108, %v1606
  %v1608 = vpop.f32.mrf.mxu0
  %v1609 = vadd.f32 %v108, %v1608
  %1610 = vmatmul.bf16.gmra.mxu0 %v458
  %v1611 = vpop.f32.mrf.mxu0
  %v1612 = vadd.f32 %v108, %v1611
  %v1613 = vpop.f32.mrf.mxu0
  %v1614 = vadd.f32 %v108, %v1613
  %1615 = vmatmul.bf16.gmra.mxu0 %v461
  %v1616 = vpop.f32.mrf.mxu0
  %v1617 = vadd.f32 %v108, %v1616
  %v1618 = vpop.f32.mrf.mxu0
  %v1619 = vadd.f32 %v108, %v1618
  %1620 = vmatmul.bf16.gmra.mxu0 %v464
  %v1621 = vpop.f32.mrf.mxu0
  %v1622 = vadd.f32 %v108, %v1621
  %v1623 = vpop.f32.mrf.mxu0
  %v1624 = vadd.f32 %v108, %v1623
  %1625 = vmatmul.bf16.gmra.mxu0 %v467
  %v1626 = vpop.f32.mrf.mxu0
  %v1627 = vadd.f32 %v108, %v1626
  %v1628 = vpop.f32.mrf.mxu0
  %v1629 = vadd.f32 %v108, %v1628
  %1630 = vmatmul.bf16.gmra.mxu0 %v470
  %v1631 = vpop.f32.mrf.mxu0
  %v1632 = vadd.f32 %v108, %v1631
  %v1633 = vpop.f32.mrf.mxu0
  %v1634 = vadd.f32 %v108, %v1633
  %1635 = vdwg.mxu0
  %v1636 = vmax.f32 %v482, 0.0
  %v1637 = vmax.f32 %v676, 0.0
  %v1638 = vmax.f32 %v870, 0.0
  %v1639 = vmax.f32 %v1064, 0.0
  %v1640 = vmax.f32 %v1258, 0.0
  %v1641 = vmax.f32 %v1452, 0.0
  %v1642 = vmax.f32 %v484, 0.0
  %v1643 = vmax.f32 %v678, 0.0
  %v1644 = vmax.f32 %v872, 0.0
  %v1645 = vmax.f32 %v1066, 0.0
  %v1646 = vmax.f32 %v1260, 0.0
  %v1647 = vmax.f32 %v1454, 0.0
  %v1648 = vmax.f32 %v487, 0.0
  %v1649 = vmax.f32 %v681, 0.0
  %v1650 = vmax.f32 %v875, 0.0
  %v1651 = vmax.f32 %v1069, 0.0
  %v1652 = vmax.f32 %v1263, 0.0
  %v1653 = vmax.f32 %v1457, 0.0
  %v1654 = vmax.f32 %v489, 0.0
  %v1655 = vmax.f32 %v683, 0.0
  %v1656 = vmax.f32 %v877, 0.0
  %v1657 = vmax.f32 %v1071, 0.0
  %v1658 = vmax.f32 %v1265, 0.0
  %v1659 = vmax.f32 %v1459, 0.0
  %v1660 = vmax.f32 %v492, 0.0
  %v1661 = vmax.f32 %v686, 0.0
  %v1662 = vmax.f32 %v880, 0.0
  %v1663 = vmax.f32 %v1074, 0.0
  %v1664 = vmax.f32 %v1268, 0.0
  %v1665 = vmax.f32 %v1462, 0.0
  %v1666 = vmax.f32 %v494, 0.0
  %v1667 = vmax.f32 %v688, 0.0
  %v1668 = vmax.f32 %v882, 0.0
  %v1669 = vmax.f32 %v1076, 0.0
  %v1670 = vmax.f32 %v1270, 0.0
  %v1671 = vmax.f32 %v1464, 0.0
  %v1672 = vmax.f32 %v497, 0.0
  %v1673 = vmax.f32 %v691, 0.0
  %v1674 = vmax.f32 %v885, 0.0
  %v1675 = vmax.f32 %v1079, 0.0
  %v1676 = vmax.f32 %v1273, 0.0
  %v1677 = vmax.f32 %v1467, 0.0
  %v1678 = vmax.f32 %v499, 0.0
  %v1679 = vmax.f32 %v693, 0.0
  %v1680 = vmax.f32 %v887, 0.0
  %v1681 = vmax.f32 %v1081, 0.0
  %v1682 = vmax.f32 %v1275, 0.0
  %v1683 = vmax.f32 %v1469, 0.0
  %v1684 = vmax.f32 %v502, 0.0
  %v1685 = vmax.f32 %v696, 0.0
  %v1686 = vmax.f32 %v890, 0.0
  %v1687 = vmax.f32 %v1084, 0.0
  %v1688 = vmax.f32 %v1278, 0.0
  %v1689 = vmax.f32 %v1472, 0.0
  %v1690 = vmax.f32 %v504, 0.0
  %v1691 = vmax.f32 %v698, 0.0
  %v1692 = vmax.f32 %v892, 0.0
  %v1693 = vmax.f32 %v1086, 0.0
  %v1694 = vmax.f32 %v1280, 0.0
  %v1695 = vmax.f32 %v1474, 0.0
  %v1696 = vmax.f32 %v507, 0.0
  %v1697 = vmax.f32 %v701, 0.0
  %v1698 = vmax.f32 %v895, 0.0
  %v1699 = vmax.f32 %v1089, 0.0
  %v1700 = vmax.f32 %v1283, 0.0
  %v1701 = vmax.f32 %v1477, 0.0
  %v1702 = vmax.f32 %v509, 0.0
  %v1703 = vmax.f32 %v703, 0.0
  %v1704 = vmax.f32 %v897, 0.0
  %v1705 = vmax.f32 %v1091, 0.0
  %v1706 = vmax.f32 %v1285, 0.0
  %v1707 = vmax.f32 %v1479, 0.0
  %v1708 = vmax.f32 %v512, 0.0
  %v1709 = vmax.f32 %v706, 0.0
  %v1710 = vmax.f32 %v900, 0.0
  %v1711 = vmax.f32 %v1094, 0.0
  %v1712 = vmax.f32 %v1288, 0.0
  %v1713 = vmax.f32 %v1482, 0.0
  %v1714 = vmax.f32 %v514, 0.0
  %v1715 = vmax.f32 %v708, 0.0
  %v1716 = vmax.f32 %v902, 0.0
  %v1717 = vmax.f32 %v1096, 0.0
  %v1718 = vmax.f32 %v1290, 0.0
  %v1719 = vmax.f32 %v1484, 0.0
  %v1720 = vmax.f32 %v517, 0.0
  %v1721 = vmax.f32 %v711, 0.0
  %v1722 = vmax.f32 %v905, 0.0
  %v1723 = vmax.f32 %v1099, 0.0
  %v1724 = vmax.f32 %v1293, 0.0
  %v1725 = vmax.f32 %v1487, 0.0
  %v1726 = vmax.f32 %v519, 0.0
  %v1727 = vmax.f32 %v713, 0.0
  %v1728 = vmax.f32 %v907, 0.0
  %v1729 = vmax.f32 %v1101, 0.0
  %v1730 = vmax.f32 %v1295, 0.0
  %v1731 = vmax.f32 %v1489, 0.0
  %v1732 = vmax.f32 %v522, 0.0
  %v1733 = vmax.f32 %v716, 0.0
  %v1734 = vmax.f32 %v910, 0.0
  %v1735 = vmax.f32 %v1104, 0.0
  %v1736 = vmax.f32 %v1298, 0.0
  %v1737 = vmax.f32 %v1492, 0.0
  %v1738 = vmax.f32 %v524, 0.0
  %v1739 = vmax.f32 %v718, 0.0
  %v1740 = vmax.f32 %v912, 0.0
  %v1741 = vmax.f32 %v1106, 0.0
  %v1742 = vmax.f32 %v1300, 0.0
  %v1743 = vmax.f32 %v1494, 0.0
  %v1744 = vmax.f32 %v527, 0.0
  %v1745 = vmax.f32 %v721, 0.0
  %v1746 = vmax.f32 %v915, 0.0
  %v1747 = vmax.f32 %v1109, 0.0
  %v1748 = vmax.f32 %v1303, 0.0
  %v1749 = vmax.f32 %v1497, 0.0
  %v1750 = vmax.f32 %v529, 0.0
  %v1751 = vmax.f32 %v723, 0.0
  %v1752 = vmax.f32 %v917, 0.0
  %v1753 = vmax.f32 %v1111, 0.0
  %v1754 = vmax.f32 %v1305, 0.0
  %v1755 = vmax.f32 %v1499, 0.0
  %v1756 = vmax.f32 %v532, 0.0
  %v1757 = vmax.f32 %v726, 0.0
  %v1758 = vmax.f32 %v920, 0.0
  %v1759 = vmax.f32 %v1114, 0.0
  %v1760 = vmax.f32 %v1308, 0.0
  %v1761 = vmax.f32 %v1502, 0.0
  %v1762 = vmax.f32 %v534, 0.0
  %v1763 = vmax.f32 %v728, 0.0
  %v1764 = vmax.f32 %v922, 0.0
  %v1765 = vmax.f32 %v1116, 0.0
  %v1766 = vmax.f32 %v1310, 0.0
  %v1767 = vmax.f32 %v1504, 0.0
  %v1768 = vmax.f32 %v537, 0.0
  %v1769 = vmax.f32 %v731, 0.0
  %v1770 = vmax.f32 %v925, 0.0
  %v1771 = vmax.f32 %v1119, 0.0
  %v1772 = vmax.f32 %v1313, 0.0
  %v1773 = vmax.f32 %v1507, 0.0
  %v1774 = vmax.f32 %v539, 0.0
  %v1775 = vmax.f32 %v733, 0.0
  %v1776 = vmax.f32 %v927, 0.0
  %v1777 = vmax.f32 %v1121, 0.0
  %v1778 = vmax.f32 %v1315, 0.0
  %v1779 = vmax.f32 %v1509, 0.0
  %v1780 = vmax.f32 %v542, 0.0
  %v1781 = vmax.f32 %v736, 0.0
  %v1782 = vmax.f32 %v930, 0.0
  %v1783 = vmax.f32 %v1124, 0.0
  %v1784 = vmax.f32 %v1318, 0.0
  %v1785 = vmax.f32 %v1512, 0.0
  %v1786 = vmax.f32 %v544, 0.0
  %v1787 = vmax.f32 %v738, 0.0
  %v1788 = vmax.f32 %v932, 0.0
  %v1789 = vmax.f32 %v1126, 0.0
  %v1790 = vmax.f32 %v1320, 0.0
  %v1791 = vmax.f32 %v1514, 0.0
  %v1792 = vmax.f32 %v547, 0.0
  %v1793 = vmax.f32 %v741, 0.0
  %v1794 = vmax.f32 %v935, 0.0
  %v1795 = vmax.f32 %v1129, 0.0
  %v1796 = vmax.f32 %v1323, 0.0
  %v1797 = vmax.f32 %v1517, 0.0
  %v1798 = vmax.f32 %v549, 0.0
  %v1799 = vmax.f32 %v743, 0.0
  %v1800 = vmax.f32 %v937, 0.0
  %v1801 = vmax.f32 %v1131, 0.0
  %v1802 = vmax.f32 %v1325, 0.0
  %v1803 = vmax.f32 %v1519, 0.0
  %v1804 = vmax.f32 %v552, 0.0
  %v1805 = vmax.f32 %v746, 0.0
  %v1806 = vmax.f32 %v940, 0.0
  %v1807 = vmax.f32 %v1134, 0.0
  %v1808 = vmax.f32 %v1328, 0.0
  %v1809 = vmax.f32 %v1522, 0.0
  %v1810 = vmax.f32 %v554, 0.0
  %v1811 = vmax.f32 %v748, 0.0
  %v1812 = vmax.f32 %v942, 0.0
  %v1813 = vmax.f32 %v1136, 0.0
  %v1814 = vmax.f32 %v1330, 0.0
  %v1815 = vmax.f32 %v1524, 0.0
  %v1816 = vmax.f32 %v557, 0.0
  %v1817 = vmax.f32 %v751, 0.0
  %v1818 = vmax.f32 %v945, 0.0
  %v1819 = vmax.f32 %v1139, 0.0
  %v1820 = vmax.f32 %v1333, 0.0
  %v1821 = vmax.f32 %v1527, 0.0
  %v1822 = vmax.f32 %v559, 0.0
  %v1823 = vmax.f32 %v753, 0.0
  %v1824 = vmax.f32 %v947, 0.0
  %v1825 = vmax.f32 %v1141, 0.0
  %v1826 = vmax.f32 %v1335, 0.0
  %v1827 = vmax.f32 %v1529, 0.0
  %v1828 = vmax.f32 %v562, 0.0
  %v1829 = vmax.f32 %v756, 0.0
  %v1830 = vmax.f32 %v950, 0.0
  %v1831 = vmax.f32 %v1144, 0.0
  %v1832 = vmax.f32 %v1338, 0.0
  %v1833 = vmax.f32 %v1532, 0.0
  %v1834 = vmax.f32 %v564, 0.0
  %v1835 = vmax.f32 %v758, 0.0
  %v1836 = vmax.f32 %v952, 0.0
  %v1837 = vmax.f32 %v1146, 0.0
  %v1838 = vmax.f32 %v1340, 0.0
  %v1839 = vmax.f32 %v1534, 0.0
  %v1840 = vmax.f32 %v567, 0.0
  %v1841 = vmax.f32 %v761, 0.0
  %v1842 = vmax.f32 %v955, 0.0
  %v1843 = vmax.f32 %v1149, 0.0
  %v1844 = vmax.f32 %v1343, 0.0
  %v1845 = vmax.f32 %v1537, 0.0
  %v1846 = vmax.f32 %v569, 0.0
  %v1847 = vmax.f32 %v763, 0.0
  %v1848 = vmax.f32 %v957, 0.0
  %v1849 = vmax.f32 %v1151, 0.0
  %v1850 = vmax.f32 %v1345, 0.0
  %v1851 = vmax.f32 %v1539, 0.0
  %v1852 = vmax.f32 %v572, 0.0
  %v1853 = vmax.f32 %v766, 0.0
  %v1854 = vmax.f32 %v960, 0.0
  %v1855 = vmax.f32 %v1154, 0.0
  %v1856 = vmax.f32 %v1348, 0.0
  %v1857 = vmax.f32 %v1542, 0.0
  %v1858 = vmax.f32 %v574, 0.0
  %v1859 = vmax.f32 %v768, 0.0
  %v1860 = vmax.f32 %v962, 0.0
  %v1861 = vmax.f32 %v1156, 0.0
  %v1862 = vmax.f32 %v1350, 0.0
  %v1863 = vmax.f32 %v1544, 0.0
  %v1864 = vmax.f32 %v577, 0.0
  %v1865 = vmax.f32 %v771, 0.0
  %v1866 = vmax.f32 %v965, 0.0
  %v1867 = vmax.f32 %v1159, 0.0
  %v1868 = vmax.f32 %v1353, 0.0
  %v1869 = vmax.f32 %v1547, 0.0
  %v1870 = vmax.f32 %v579, 0.0
  %v1871 = vmax.f32 %v773, 0.0
  %v1872 = vmax.f32 %v967, 0.0
  %v1873 = vmax.f32 %v1161, 0.0
  %v1874 = vmax.f32 %v1355, 0.0
  %v1875 = vmax.f32 %v1549, 0.0
  %v1876 = vmax.f32 %v582, 0.0
  %v1877 = vmax.f32 %v776, 0.0
  %v1878 = vmax.f32 %v970, 0.0
  %v1879 = vmax.f32 %v1164, 0.0
  %v1880 = vmax.f32 %v1358, 0.0
  %v1881 = vmax.f32 %v1552, 0.0
  %v1882 = vmax.f32 %v584, 0.0
  %v1883 = vmax.f32 %v778, 0.0
  %v1884 = vmax.f32 %v972, 0.0
  %v1885 = vmax.f32 %v1166, 0.0
  %v1886 = vmax.f32 %v1360, 0.0
  %v1887 = vmax.f32 %v1554, 0.0
  %v1888 = vmax.f32 %v587, 0.0
  %v1889 = vmax.f32 %v781, 0.0
  %v1890 = vmax.f32 %v975, 0.0
  %v1891 = vmax.f32 %v1169, 0.0
  %v1892 = vmax.f32 %v1363, 0.0
  %v1893 = vmax.f32 %v1557, 0.0
  %v1894 = vmax.f32 %v589, 0.0
  %v1895 = vmax.f32 %v783, 0.0
  %v1896 = vmax.f32 %v977, 0.0
  %v1897 = vmax.f32 %v1171, 0.0
  %v1898 = vmax.f32 %v1365, 0.0
  %v1899 = vmax.f32 %v1559, 0.0
  %v1900 = vmax.f32 %v592, 0.0
  %v1901 = vmax.f32 %v786, 0.0
  %v1902 = vmax.f32 %v980, 0.0
  %v1903 = vmax.f32 %v1174, 0.0
  %v1904 = vmax.f32 %v1368, 0.0
  %v1905 = vmax.f32 %v1562, 0.0
  %v1906 = vmax.f32 %v594, 0.0
  %v1907 = vmax.f32 %v788, 0.0
  %v1908 = vmax.f32 %v982, 0.0
  %v1909 = vmax.f32 %v1176, 0.0
  %v1910 = vmax.f32 %v1370, 0.0
  %v1911 = vmax.f32 %v1564, 0.0
  %v1912 = vmax.f32 %v597, 0.0
  %v1913 = vmax.f32 %v791, 0.0
  %v1914 = vmax.f32 %v985, 0.0
  %v1915 = vmax.f32 %v1179, 0.0
  %v1916 = vmax.f32 %v1373, 0.0
  %v1917 = vmax.f32 %v1567, 0.0
  %v1918 = vmax.f32 %v599, 0.0
  %v1919 = vmax.f32 %v793, 0.0
  %v1920 = vmax.f32 %v987, 0.0
  %v1921 = vmax.f32 %v1181, 0.0
  %v1922 = vmax.f32 %v1375, 0.0
  %v1923 = vmax.f32 %v1569, 0.0
  %v1924 = vmax.f32 %v602, 0.0
  %v1925 = vmax.f32 %v796, 0.0
  %v1926 = vmax.f32 %v990, 0.0
  %v1927 = vmax.f32 %v1184, 0.0
  %v1928 = vmax.f32 %v1378, 0.0
  %v1929 = vmax.f32 %v1572, 0.0
  %v1930 = vmax.f32 %v604, 0.0
  %v1931 = vmax.f32 %v798, 0.0
  %v1932 = vmax.f32 %v992, 0.0
  %v1933 = vmax.f32 %v1186, 0.0
  %v1934 = vmax.f32 %v1380, 0.0
  %v1935 = vmax.f32 %v1574, 0.0
  %v1936 = vmax.f32 %v607, 0.0
  %v1937 = vmax.f32 %v801, 0.0
  %v1938 = vmax.f32 %v995, 0.0
  %v1939 = vmax.f32 %v1189, 0.0
  %v1940 = vmax.f32 %v1383, 0.0
  %v1941 = vmax.f32 %v1577, 0.0
  %v1942 = vmax.f32 %v609, 0.0
  %v1943 = vmax.f32 %v803, 0.0
  %v1944 = vmax.f32 %v997, 0.0
  %v1945 = vmax.f32 %v1191, 0.0
  %v1946 = vmax.f32 %v1385, 0.0
  %v1947 = vmax.f32 %v1579, 0.0
  %v1948 = vmax.f32 %v612, 0.0
  %v1949 = vmax.f32 %v806, 0.0
  %v1950 = vmax.f32 %v1000, 0.0
  %v1951 = vmax.f32 %v1194, 0.0
  %v1952 = vmax.f32 %v1388, 0.0
  %v1953 = vmax.f32 %v1582, 0.0
  %v1954 = vmax.f32 %v614, 0.0
  %v1955 = vmax.f32 %v808, 0.0
  %v1956 = vmax.f32 %v1002, 0.0
  %v1957 = vmax.f32 %v1196, 0.0
  %v1958 = vmax.f32 %v1390, 0.0
  %v1959 = vmax.f32 %v1584, 0.0
  %v1960 = vmax.f32 %v617, 0.0
  %v1961 = vmax.f32 %v811, 0.0
  %v1962 = vmax.f32 %v1005, 0.0
  %v1963 = vmax.f32 %v1199, 0.0
  %v1964 = vmax.f32 %v1393, 0.0
  %v1965 = vmax.f32 %v1587, 0.0
  %v1966 = vmax.f32 %v619, 0.0
  %v1967 = vmax.f32 %v813, 0.0
  %v1968 = vmax.f32 %v1007, 0.0
  %v1969 = vmax.f32 %v1201, 0.0
  %v1970 = vmax.f32 %v1395, 0.0
  %v1971 = vmax.f32 %v1589, 0.0
  %v1972 = vmax.f32 %v622, 0.0
  %v1973 = vmax.f32 %v816, 0.0
  %v1974 = vmax.f32 %v1010, 0.0
  %v1975 = vmax.f32 %v1204, 0.0
  %v1976 = vmax.f32 %v1398, 0.0
  %v1977 = vmax.f32 %v1592, 0.0
  %v1978 = vmax.f32 %v624, 0.0
  %v1979 = vmax.f32 %v818, 0.0
  %v1980 = vmax.f32 %v1012, 0.0
  %v1981 = vmax.f32 %v1206, 0.0
  %v1982 = vmax.f32 %v1400, 0.0
  %v1983 = vmax.f32 %v1594, 0.0
  %v1984 = vmax.f32 %v627, 0.0
  %v1985 = vmax.f32 %v821, 0.0
  %v1986 = vmax.f32 %v1015, 0.0
  %v1987 = vmax.f32 %v1209, 0.0
  %v1988 = vmax.f32 %v1403, 0.0
  %v1989 = vmax.f32 %v1597, 0.0
  %v1990 = vmax.f32 %v629, 0.0
  %v1991 = vmax.f32 %v823, 0.0
  %v1992 = vmax.f32 %v1017, 0.0
  %v1993 = vmax.f32 %v1211, 0.0
  %v1994 = vmax.f32 %v1405, 0.0
  %v1995 = vmax.f32 %v1599, 0.0
  %v1996 = vmax.f32 %v632, 0.0
  %v1997 = vmax.f32 %v826, 0.0
  %v1998 = vmax.f32 %v1020, 0.0
  %v1999 = vmax.f32 %v1214, 0.0
  %v2000 = vmax.f32 %v1408, 0.0
  %v2001 = vmax.f32 %v1602, 0.0
  %v2002 = vmax.f32 %v634, 0.0
  %v2003 = vmax.f32 %v828, 0.0
  %v2004 = vmax.f32 %v1022, 0.0
  %v2005 = vmax.f32 %v1216, 0.0
  %v2006 = vmax.f32 %v1410, 0.0
  %v2007 = vmax.f32 %v1604, 0.0
  %v2008 = vmax.f32 %v637, 0.0
  %v2009 = vmax.f32 %v831, 0.0
  %v2010 = vmax.f32 %v1025, 0.0
  %v2011 = vmax.f32 %v1219, 0.0
  %v2012 = vmax.f32 %v1413, 0.0
  %v2013 = vmax.f32 %v1607, 0.0
  %v2014 = vmax.f32 %v639, 0.0
  %v2015 = vmax.f32 %v833, 0.0
  %v2016 = vmax.f32 %v1027, 0.0
  %v2017 = vmax.f32 %v1221, 0.0
  %v2018 = vmax.f32 %v1415, 0.0
  %v2019 = vmax.f32 %v1609, 0.0
  %v2020 = vmax.f32 %v642, 0.0
  %v2021 = vmax.f32 %v836, 0.0
  %v2022 = vmax.f32 %v1030, 0.0
  %v2023 = vmax.f32 %v1224, 0.0
  %v2024 = vmax.f32 %v1418, 0.0
  %v2025 = vmax.f32 %v1612, 0.0
  %v2026 = vmax.f32 %v644, 0.0
  %v2027 = vmax.f32 %v838, 0.0
  %v2028 = vmax.f32 %v1032, 0.0
  %v2029 = vmax.f32 %v1226, 0.0
  %v2030 = vmax.f32 %v1420, 0.0
  %v2031 = vmax.f32 %v1614, 0.0
  %v2032 = vmax.f32 %v647, 0.0
  %v2033 = vmax.f32 %v841, 0.0
  %v2034 = vmax.f32 %v1035, 0.0
  %v2035 = vmax.f32 %v1229, 0.0
  %v2036 = vmax.f32 %v1423, 0.0
  %v2037 = vmax.f32 %v1617, 0.0
  %v2038 = vmax.f32 %v649, 0.0
  %v2039 = vmax.f32 %v843, 0.0
  %v2040 = vmax.f32 %v1037, 0.0
  %v2041 = vmax.f32 %v1231, 0.0
  %v2042 = vmax.f32 %v1425, 0.0
  %v2043 = vmax.f32 %v1619, 0.0
  %v2044 = vmax.f32 %v652, 0.0
  %v2045 = vmax.f32 %v846, 0.0
  %v2046 = vmax.f32 %v1040, 0.0
  %v2047 = vmax.f32 %v1234, 0.0
  %v2048 = vmax.f32 %v1428, 0.0
  %v2049 = vmax.f32 %v1622, 0.0
  %v2050 = vmax.f32 %v654, 0.0
  %v2051 = vmax.f32 %v848, 0.0
  %v2052 = vmax.f32 %v1042, 0.0
  %v2053 = vmax.f32 %v1236, 0.0
  %v2054 = vmax.f32 %v1430, 0.0
  %v2055 = vmax.f32 %v1624, 0.0
  %v2056 = vmax.f32 %v657, 0.0
  %v2057 = vmax.f32 %v851, 0.0
  %v2058 = vmax.f32 %v1045, 0.0
  %v2059 = vmax.f32 %v1239, 0.0
  %v2060 = vmax.f32 %v1433, 0.0
  %v2061 = vmax.f32 %v1627, 0.0
  %v2062 = vmax.f32 %v659, 0.0
  %v2063 = vmax.f32 %v853, 0.0
  %v2064 = vmax.f32 %v1047, 0.0
  %v2065 = vmax.f32 %v1241, 0.0
  %v2066 = vmax.f32 %v1435, 0.0
  %v2067 = vmax.f32 %v1629, 0.0
  %v2068 = vmax.f32 %v662, 0.0
  %v2069 = vmax.f32 %v856, 0.0
  %v2070 = vmax.f32 %v1050, 0.0
  %v2071 = vmax.f32 %v1244, 0.0
  %v2072 = vmax.f32 %v1438, 0.0
  %v2073 = vmax.f32 %v1632, 0.0
  %v2074 = vmax.f32 %v664, 0.0
  %v2075 = vmax.f32 %v858, 0.0
  %v2076 = vmax.f32 %v1052, 0.0
  %v2077 = vmax.f32 %v1246, 0.0
  %v2078 = vmax.f32 %v1440, 0.0
  %v2079 = vmax.f32 %v1634, 0.0
  %2080 = vst [vmem:[%s3] sm:$0xff] %v1636
  %2081 = vst [vmem:[%s3 + $0x8] sm:$0xff] %v1637
  %2082 = vst [vmem:[%s3 + $0x10] sm:$0xff] %v1638
  %2083 = vst [vmem:[%s3 + $0x18] sm:$0xff] %v1639
  %2084 = vst [vmem:[%s3 + $0x20] sm:$0xff] %v1640
  %2085 = vst [vmem:[%s3 + $0x28] sm:$0xff] %v1641
  %2086 = vst [vmem:[%s3 + $0x30] sm:$0xff] %v1642
  %2087 = vst [vmem:[%s3 + $0x38] sm:$0xff] %v1643
  %2088 = vst [vmem:[%s3 + $0x40] sm:$0xff] %v1644
  %2089 = vst [vmem:[%s3 + $0x48] sm:$0xff] %v1645
  %2090 = vst [vmem:[%s3 + $0x50] sm:$0xff] %v1646
  %2091 = vst [vmem:[%s3 + $0x58] sm:$0xff] %v1647
  %2092 = vst [vmem:[%s3 + $0x60] sm:$0xff] %v1648
  %2093 = vst [vmem:[%s3 + $0x68] sm:$0xff] %v1649
  %2094 = vst [vmem:[%s3 + $0x70] sm:$0xff] %v1650
  %2095 = vst [vmem:[%s3 + $0x78] sm:$0xff] %v1651
  %2096 = vst [vmem:[%s3 + $0x80] sm:$0xff] %v1652
  %2097 = vst [vmem:[%s3 + $0x88] sm:$0xff] %v1653
  %2098 = vst [vmem:[%s3 + $0x90] sm:$0xff] %v1654
  %2099 = vst [vmem:[%s3 + $0x98] sm:$0xff] %v1655
  %2100 = vst [vmem:[%s3 + $0xa0] sm:$0xff] %v1656
  %2101 = vst [vmem:[%s3 + $0xa8] sm:$0xff] %v1657
  %2102 = vst [vmem:[%s3 + $0xb0] sm:$0xff] %v1658
  %2103 = vst [vmem:[%s3 + $0xb8] sm:$0xff] %v1659
  %2104 = vst [vmem:[%s3 + $0xc0] sm:$0xff] %v1660
  %2105 = vst [vmem:[%s3 + $0xc8] sm:$0xff] %v1661
  %2106 = vst [vmem:[%s3 + $0xd0] sm:$0xff] %v1662
  %2107 = vst [vmem:[%s3 + $0xd8] sm:$0xff] %v1663
  %2108 = vst [vmem:[%s3 + $0xe0] sm:$0xff] %v1664
  %2109 = vst [vmem:[%s3 + $0xe8] sm:$0xff] %v1665
  %2110 = vst [vmem:[%s3 + $0xf0] sm:$0xff] %v1666
  %2111 = vst [vmem:[%s3 + $0xf8] sm:$0xff] %v1667
  %2112 = vst [vmem:[%s3 + $0x100] sm:$0xff] %v1668
  %2113 = vst [vmem:[%s3 + $0x108] sm:$0xff] %v1669
  %2114 = vst [vmem:[%s3 + $0x110] sm:$0xff] %v1670
  %2115 = vst [vmem:[%s3 + $0x118] sm:$0xff] %v1671
  %2116 = vst [vmem:[%s3 + $0x120] sm:$0xff] %v1672
  %2117 = vst [vmem:[%s3 + $0x128] sm:$0xff] %v1673
  %2118 = vst [vmem:[%s3 + $0x130] sm:$0xff] %v1674
  %2119 = vst [vmem:[%s3 + $0x138] sm:$0xff] %v1675
  %2120 = vst [vmem:[%s3 + $0x140] sm:$0xff] %v1676
  %2121 = vst [vmem:[%s3 + $0x148] sm:$0xff] %v1677
  %2122 = vst [vmem:[%s3 + $0x150] sm:$0xff] %v1678
  %2123 = vst [vmem:[%s3 + $0x158] sm:$0xff] %v1679
  %2124 = vst [vmem:[%s3 + $0x160] sm:$0xff] %v1680
  %2125 = vst [vmem:[%s3 + $0x168] sm:$0xff] %v1681
  %2126 = vst [vmem:[%s3 + $0x170] sm:$0xff] %v1682
  %2127 = vst [vmem:[%s3 + $0x178] sm:$0xff] %v1683
  %2128 = vst [vmem:[%s3 + $0x180] sm:$0xff] %v1684
  %2129 = vst [vmem:[%s3 + $0x188] sm:$0xff] %v1685
  %2130 = vst [vmem:[%s3 + $0x190] sm:$0xff] %v1686
  %2131 = vst [vmem:[%s3 + $0x198] sm:$0xff] %v1687
  %2132 = vst [vmem:[%s3 + $0x1a0] sm:$0xff] %v1688
  %2133 = vst [vmem:[%s3 + $0x1a8] sm:$0xff] %v1689
  %2134 = vst [vmem:[%s3 + $0x1b0] sm:$0xff] %v1690
  %2135 = vst [vmem:[%s3 + $0x1b8] sm:$0xff] %v1691
  %2136 = vst [vmem:[%s3 + $0x1c0] sm:$0xff] %v1692
  %2137 = vst [vmem:[%s3 + $0x1c8] sm:$0xff] %v1693
  %2138 = vst [vmem:[%s3 + $0x1d0] sm:$0xff] %v1694
  %2139 = vst [vmem:[%s3 + $0x1d8] sm:$0xff] %v1695
  %2140 = vst [vmem:[%s3 + $0x1e0] sm:$0xff] %v1696
  %2141 = vst [vmem:[%s3 + $0x1e8] sm:$0xff] %v1697
  %2142 = vst [vmem:[%s3 + $0x1f0] sm:$0xff] %v1698
  %2143 = vst [vmem:[%s3 + $0x1f8] sm:$0xff] %v1699
  %2144 = vst [vmem:[%s3 + $0x200] sm:$0xff] %v1700
  %2145 = vst [vmem:[%s3 + $0x208] sm:$0xff] %v1701
  %2146 = vst [vmem:[%s3 + $0x210] sm:$0xff] %v1702
  %2147 = vst [vmem:[%s3 + $0x218] sm:$0xff] %v1703
  %2148 = vst [vmem:[%s3 + $0x220] sm:$0xff] %v1704
  %2149 = vst [vmem:[%s3 + $0x228] sm:$0xff] %v1705
  %2150 = vst [vmem:[%s3 + $0x230] sm:$0xff] %v1706
  %2151 = vst [vmem:[%s3 + $0x238] sm:$0xff] %v1707
  %2152 = vst [vmem:[%s3 + $0x240] sm:$0xff] %v1708
  %2153 = vst [vmem:[%s3 + $0x248] sm:$0xff] %v1709
  %2154 = vst [vmem:[%s3 + $0x250] sm:$0xff] %v1710
  %2155 = vst [vmem:[%s3 + $0x258] sm:$0xff] %v1711
  %2156 = vst [vmem:[%s3 + $0x260] sm:$0xff] %v1712
  %2157 = vst [vmem:[%s3 + $0x268] sm:$0xff] %v1713
  %2158 = vst [vmem:[%s3 + $0x270] sm:$0xff] %v1714
  %2159 = vst [vmem:[%s3 + $0x278] sm:$0xff] %v1715
  %2160 = vst [vmem:[%s3 + $0x280] sm:$0xff] %v1716
  %2161 = vst [vmem:[%s3 + $0x288] sm:$0xff] %v1717
  %2162 = vst [vmem:[%s3 + $0x290] sm:$0xff] %v1718
  %2163 = vst [vmem:[%s3 + $0x298] sm:$0xff] %v1719
  %2164 = vst [vmem:[%s3 + $0x2a0] sm:$0xff] %v1720
  %2165 = vst [vmem:[%s3 + $0x2a8] sm:$0xff] %v1721
  %2166 = vst [vmem:[%s3 + $0x2b0] sm:$0xff] %v1722
  %2167 = vst [vmem:[%s3 + $0x2b8] sm:$0xff] %v1723
  %2168 = vst [vmem:[%s3 + $0x2c0] sm:$0xff] %v1724
  %2169 = vst [vmem:[%s3 + $0x2c8] sm:$0xff] %v1725
  %2170 = vst [vmem:[%s3 + $0x2d0] sm:$0xff] %v1726
  %2171 = vst [vmem:[%s3 + $0x2d8] sm:$0xff] %v1727
  %2172 = vst [vmem:[%s3 + $0x2e0] sm:$0xff] %v1728
  %2173 = vst [vmem:[%s3 + $0x2e8] sm:$0xff] %v1729
  %2174 = vst [vmem:[%s3 + $0x2f0] sm:$0xff] %v1730
  %2175 = vst [vmem:[%s3 + $0x2f8] sm:$0xff] %v1731
  %2176 = vst [vmem:[%s3 + $0x300] sm:$0xff] %v1732
  %2177 = vst [vmem:[%s3 + $0x308] sm:$0xff] %v1733
  %2178 = vst [vmem:[%s3 + $0x310] sm:$0xff] %v1734
  %2179 = vst [vmem:[%s3 + $0x318] sm:$0xff] %v1735
  %2180 = vst [vmem:[%s3 + $0x320] sm:$0xff] %v1736
  %2181 = vst [vmem:[%s3 + $0x328] sm:$0xff] %v1737
  %2182 = vst [vmem:[%s3 + $0x330] sm:$0xff] %v1738
  %2183 = vst [vmem:[%s3 + $0x338] sm:$0xff] %v1739
  %2184 = vst [vmem:[%s3 + $0x340] sm:$0xff] %v1740
  %2185 = vst [vmem:[%s3 + $0x348] sm:$0xff] %v1741
  %2186 = vst [vmem:[%s3 + $0x350] sm:$0xff] %v1742
  %2187 = vst [vmem:[%s3 + $0x358] sm:$0xff] %v1743
  %2188 = vst [vmem:[%s3 + $0x360] sm:$0xff] %v1744
  %2189 = vst [vmem:[%s3 + $0x368] sm:$0xff] %v1745
  %2190 = vst [vmem:[%s3 + $0x370] sm:$0xff] %v1746
  %2191 = vst [vmem:[%s3 + $0x378] sm:$0xff] %v1747
  %2192 = vst [vmem:[%s3 + $0x380] sm:$0xff] %v1748
  %2193 = vst [vmem:[%s3 + $0x388] sm:$0xff] %v1749
  %2194 = vst [vmem:[%s3 + $0x390] sm:$0xff] %v1750
  %2195 = vst [vmem:[%s3 + $0x398] sm:$0xff] %v1751
  %2196 = vst [vmem:[%s3 + $0x3a0] sm:$0xff] %v1752
  %2197 = vst [vmem:[%s3 + $0x3a8] sm:$0xff] %v1753
  %2198 = vst [vmem:[%s3 + $0x3b0] sm:$0xff] %v1754
  %2199 = vst [vmem:[%s3 + $0x3b8] sm:$0xff] %v1755
  %2200 = vst [vmem:[%s3 + $0x3c0] sm:$0xff] %v1756
  %2201 = vst [vmem:[%s3 + $0x3c8] sm:$0xff] %v1757
  %2202 = vst [vmem:[%s3 + $0x3d0] sm:$0xff] %v1758
  %2203 = vst [vmem:[%s3 + $0x3d8] sm:$0xff] %v1759
  %2204 = vst [vmem:[%s3 + $0x3e0] sm:$0xff] %v1760
  %2205 = vst [vmem:[%s3 + $0x3e8] sm:$0xff] %v1761
  %2206 = vst [vmem:[%s3 + $0x3f0] sm:$0xff] %v1762
  %2207 = vst [vmem:[%s3 + $0x3f8] sm:$0xff] %v1763
  %2208 = vst [vmem:[%s3 + $0x400] sm:$0xff] %v1764
  %2209 = vst [vmem:[%s3 + $0x408] sm:$0xff] %v1765
  %2210 = vst [vmem:[%s3 + $0x410] sm:$0xff] %v1766
  %2211 = vst [vmem:[%s3 + $0x418] sm:$0xff] %v1767
  %2212 = vst [vmem:[%s3 + $0x420] sm:$0xff] %v1768
  %2213 = vst [vmem:[%s3 + $0x428] sm:$0xff] %v1769
  %2214 = vst [vmem:[%s3 + $0x430] sm:$0xff] %v1770
  %2215 = vst [vmem:[%s3 + $0x438] sm:$0xff] %v1771
  %2216 = vst [vmem:[%s3 + $0x440] sm:$0xff] %v1772
  %2217 = vst [vmem:[%s3 + $0x448] sm:$0xff] %v1773
  %2218 = vst [vmem:[%s3 + $0x450] sm:$0xff] %v1774
  %2219 = vst [vmem:[%s3 + $0x458] sm:$0xff] %v1775
  %2220 = vst [vmem:[%s3 + $0x460] sm:$0xff] %v1776
  %2221 = vst [vmem:[%s3 + $0x468] sm:$0xff] %v1777
  %2222 = vst [vmem:[%s3 + $0x470] sm:$0xff] %v1778
  %2223 = vst [vmem:[%s3 + $0x478] sm:$0xff] %v1779
  %2224 = vst [vmem:[%s3 + $0x480] sm:$0xff] %v1780
  %2225 = vst [vmem:[%s3 + $0x488] sm:$0xff] %v1781
  %2226 = vst [vmem:[%s3 + $0x490] sm:$0xff] %v1782
  %2227 = vst [vmem:[%s3 + $0x498] sm:$0xff] %v1783
  %2228 = vst [vmem:[%s3 + $0x4a0] sm:$0xff] %v1784
  %2229 = vst [vmem:[%s3 + $0x4a8] sm:$0xff] %v1785
  %2230 = vst [vmem:[%s3 + $0x4b0] sm:$0xff] %v1786
  %2231 = vst [vmem:[%s3 + $0x4b8] sm:$0xff] %v1787
  %2232 = vst [vmem:[%s3 + $0x4c0] sm:$0xff] %v1788
  %2233 = vst [vmem:[%s3 + $0x4c8] sm:$0xff] %v1789
  %2234 = vst [vmem:[%s3 + $0x4d0] sm:$0xff] %v1790
  %2235 = vst [vmem:[%s3 + $0x4d8] sm:$0xff] %v1791
  %2236 = vst [vmem:[%s3 + $0x4e0] sm:$0xff] %v1792
  %2237 = vst [vmem:[%s3 + $0x4e8] sm:$0xff] %v1793
  %2238 = vst [vmem:[%s3 + $0x4f0] sm:$0xff] %v1794
  %2239 = vst [vmem:[%s3 + $0x4f8] sm:$0xff] %v1795
  %2240 = vst [vmem:[%s3 + $0x500] sm:$0xff] %v1796
  %2241 = vst [vmem:[%s3 + $0x508] sm:$0xff] %v1797
  %2242 = vst [vmem:[%s3 + $0x510] sm:$0xff] %v1798
  %2243 = vst [vmem:[%s3 + $0x518] sm:$0xff] %v1799
  %2244 = vst [vmem:[%s3 + $0x520] sm:$0xff] %v1800
  %2245 = vst [vmem:[%s3 + $0x528] sm:$0xff] %v1801
  %2246 = vst [vmem:[%s3 + $0x530] sm:$0xff] %v1802
  %2247 = vst [vmem:[%s3 + $0x538] sm:$0xff] %v1803
  %2248 = vst [vmem:[%s3 + $0x540] sm:$0xff] %v1804
  %2249 = vst [vmem:[%s3 + $0x548] sm:$0xff] %v1805
  %2250 = vst [vmem:[%s3 + $0x550] sm:$0xff] %v1806
  %2251 = vst [vmem:[%s3 + $0x558] sm:$0xff] %v1807
  %2252 = vst [vmem:[%s3 + $0x560] sm:$0xff] %v1808
  %2253 = vst [vmem:[%s3 + $0x568] sm:$0xff] %v1809
  %2254 = vst [vmem:[%s3 + $0x570] sm:$0xff] %v1810
  %2255 = vst [vmem:[%s3 + $0x578] sm:$0xff] %v1811
  %2256 = vst [vmem:[%s3 + $0x580] sm:$0xff] %v1812
  %2257 = vst [vmem:[%s3 + $0x588] sm:$0xff] %v1813
  %2258 = vst [vmem:[%s3 + $0x590] sm:$0xff] %v1814
  %2259 = vst [vmem:[%s3 + $0x598] sm:$0xff] %v1815
  %2260 = vst [vmem:[%s3 + $0x5a0] sm:$0xff] %v1816
  %2261 = vst [vmem:[%s3 + $0x5a8] sm:$0xff] %v1817
  %2262 = vst [vmem:[%s3 + $0x5b0] sm:$0xff] %v1818
  %2263 = vst [vmem:[%s3 + $0x5b8] sm:$0xff] %v1819
  %2264 = vst [vmem:[%s3 + $0x5c0] sm:$0xff] %v1820
  %2265 = vst [vmem:[%s3 + $0x5c8] sm:$0xff] %v1821
  %2266 = vst [vmem:[%s3 + $0x5d0] sm:$0xff] %v1822
  %2267 = vst [vmem:[%s3 + $0x5d8] sm:$0xff] %v1823
  %2268 = vst [vmem:[%s3 + $0x5e0] sm:$0xff] %v1824
  %2269 = vst [vmem:[%s3 + $0x5e8] sm:$0xff] %v1825
  %2270 = vst [vmem:[%s3 + $0x5f0] sm:$0xff] %v1826
  %2271 = vst [vmem:[%s3 + $0x5f8] sm:$0xff] %v1827
  %2272 = vst [vmem:[%s3 + $0x600] sm:$0xff] %v1828
  %2273 = vst [vmem:[%s3 + $0x608] sm:$0xff] %v1829
  %2274 = vst [vmem:[%s3 + $0x610] sm:$0xff] %v1830
  %2275 = vst [vmem:[%s3 + $0x618] sm:$0xff] %v1831
  %2276 = vst [vmem:[%s3 + $0x620] sm:$0xff] %v1832
  %2277 = vst [vmem:[%s3 + $0x628] sm:$0xff] %v1833
  %2278 = vst [vmem:[%s3 + $0x630] sm:$0xff] %v1834
  %2279 = vst [vmem:[%s3 + $0x638] sm:$0xff] %v1835
  %2280 = vst [vmem:[%s3 + $0x640] sm:$0xff] %v1836
  %2281 = vst [vmem:[%s3 + $0x648] sm:$0xff] %v1837
  %2282 = vst [vmem:[%s3 + $0x650] sm:$0xff] %v1838
  %2283 = vst [vmem:[%s3 + $0x658] sm:$0xff] %v1839
  %2284 = vst [vmem:[%s3 + $0x660] sm:$0xff] %v1840
  %2285 = vst [vmem:[%s3 + $0x668] sm:$0xff] %v1841
  %2286 = vst [vmem:[%s3 + $0x670] sm:$0xff] %v1842
  %2287 = vst [vmem:[%s3 + $0x678] sm:$0xff] %v1843
  %2288 = vst [vmem:[%s3 + $0x680] sm:$0xff] %v1844
  %2289 = vst [vmem:[%s3 + $0x688] sm:$0xff] %v1845
  %2290 = vst [vmem:[%s3 + $0x690] sm:$0xff] %v1846
  %2291 = vst [vmem:[%s3 + $0x698] sm:$0xff] %v1847
  %2292 = vst [vmem:[%s3 + $0x6a0] sm:$0xff] %v1848
  %2293 = vst [vmem:[%s3 + $0x6a8] sm:$0xff] %v1849
  %2294 = vst [vmem:[%s3 + $0x6b0] sm:$0xff] %v1850
  %2295 = vst [vmem:[%s3 + $0x6b8] sm:$0xff] %v1851
  %2296 = vst [vmem:[%s3 + $0x6c0] sm:$0xff] %v1852
  %2297 = vst [vmem:[%s3 + $0x6c8] sm:$0xff] %v1853
  %2298 = vst [vmem:[%s3 + $0x6d0] sm:$0xff] %v1854
  %2299 = vst [vmem:[%s3 + $0x6d8] sm:$0xff] %v1855
  %2300 = vst [vmem:[%s3 + $0x6e0] sm:$0xff] %v1856
  %2301 = vst [vmem:[%s3 + $0x6e8] sm:$0xff] %v1857
  %2302 = vst [vmem:[%s3 + $0x6f0] sm:$0xff] %v1858
  %2303 = vst [vmem:[%s3 + $0x6f8] sm:$0xff] %v1859
  %2304 = vst [vmem:[%s3 + $0x700] sm:$0xff] %v1860
  %2305 = vst [vmem:[%s3 + $0x708] sm:$0xff] %v1861
  %2306 = vst [vmem:[%s3 + $0x710] sm:$0xff] %v1862
  %2307 = vst [vmem:[%s3 + $0x718] sm:$0xff] %v1863
  %2308 = vst [vmem:[%s3 + $0x720] sm:$0xff] %v1864
  %2309 = vst [vmem:[%s3 + $0x728] sm:$0xff] %v1865
  %2310 = vst [vmem:[%s3 + $0x730] sm:$0xff] %v1866
  %2311 = vst [vmem:[%s3 + $0x738] sm:$0xff] %v1867
  %2312 = vst [vmem:[%s3 + $0x740] sm:$0xff] %v1868
  %2313 = vst [vmem:[%s3 + $0x748] sm:$0xff] %v1869
  %2314 = vst [vmem:[%s3 + $0x750] sm:$0xff] %v1870
  %2315 = vst [vmem:[%s3 + $0x758] sm:$0xff] %v1871
  %2316 = vst [vmem:[%s3 + $0x760] sm:$0xff] %v1872
  %2317 = vst [vmem:[%s3 + $0x768] sm:$0xff] %v1873
  %2318 = vst [vmem:[%s3 + $0x770] sm:$0xff] %v1874
  %2319 = vst [vmem:[%s3 + $0x778] sm:$0xff] %v1875
  %2320 = vst [vmem:[%s3 + $0x780] sm:$0xff] %v1876
  %2321 = vst [vmem:[%s3 + $0x788] sm:$0xff] %v1877
  %2322 = vst [vmem:[%s3 + $0x790] sm:$0xff] %v1878
  %2323 = vst [vmem:[%s3 + $0x798] sm:$0xff] %v1879
  %2324 = vst [vmem:[%s3 + $0x7a0] sm:$0xff] %v1880
  %2325 = vst [vmem:[%s3 + $0x7a8] sm:$0xff] %v1881
  %2326 = vst [vmem:[%s3 + $0x7b0] sm:$0xff] %v1882
  %2327 = vst [vmem:[%s3 + $0x7b8] sm:$0xff] %v1883
  %2328 = vst [vmem:[%s3 + $0x7c0] sm:$0xff] %v1884
  %2329 = vst [vmem:[%s3 + $0x7c8] sm:$0xff] %v1885
  %2330 = vst [vmem:[%s3 + $0x7d0] sm:$0xff] %v1886
  %2331 = vst [vmem:[%s3 + $0x7d8] sm:$0xff] %v1887
  %2332 = vst [vmem:[%s3 + $0x7e0] sm:$0xff] %v1888
  %2333 = vst [vmem:[%s3 + $0x7e8] sm:$0xff] %v1889
  %2334 = vst [vmem:[%s3 + $0x7f0] sm:$0xff] %v1890
  %2335 = vst [vmem:[%s3 + $0x7f8] sm:$0xff] %v1891
  %2336 = vst [vmem:[%s3 + $0x800] sm:$0xff] %v1892
  %2337 = vst [vmem:[%s3 + $0x808] sm:$0xff] %v1893
  %2338 = vst [vmem:[%s3 + $0x810] sm:$0xff] %v1894
  %2339 = vst [vmem:[%s3 + $0x818] sm:$0xff] %v1895
  %2340 = vst [vmem:[%s3 + $0x820] sm:$0xff] %v1896
  %2341 = vst [vmem:[%s3 + $0x828] sm:$0xff] %v1897
  %2342 = vst [vmem:[%s3 + $0x830] sm:$0xff] %v1898
  %2343 = vst [vmem:[%s3 + $0x838] sm:$0xff] %v1899
  %2344 = vst [vmem:[%s3 + $0x840] sm:$0xff] %v1900
  %2345 = vst [vmem:[%s3 + $0x848] sm:$0xff] %v1901
  %2346 = vst [vmem:[%s3 + $0x850] sm:$0xff] %v1902
  %2347 = vst [vmem:[%s3 + $0x858] sm:$0xff] %v1903
  %2348 = vst [vmem:[%s3 + $0x860] sm:$0xff] %v1904
  %2349 = vst [vmem:[%s3 + $0x868] sm:$0xff] %v1905
  %2350 = vst [vmem:[%s3 + $0x870] sm:$0xff] %v1906
  %2351 = vst [vmem:[%s3 + $0x878] sm:$0xff] %v1907
  %2352 = vst [vmem:[%s3 + $0x880] sm:$0xff] %v1908
  %2353 = vst [vmem:[%s3 + $0x888] sm:$0xff] %v1909
  %2354 = vst [vmem:[%s3 + $0x890] sm:$0xff] %v1910
  %2355 = vst [vmem:[%s3 + $0x898] sm:$0xff] %v1911
  %2356 = vst [vmem:[%s3 + $0x8a0] sm:$0xff] %v1912
  %2357 = vst [vmem:[%s3 + $0x8a8] sm:$0xff] %v1913
  %2358 = vst [vmem:[%s3 + $0x8b0] sm:$0xff] %v1914
  %2359 = vst [vmem:[%s3 + $0x8b8] sm:$0xff] %v1915
  %2360 = vst [vmem:[%s3 + $0x8c0] sm:$0xff] %v1916
  %2361 = vst [vmem:[%s3 + $0x8c8] sm:$0xff] %v1917
  %2362 = vst [vmem:[%s3 + $0x8d0] sm:$0xff] %v1918
  %2363 = vst [vmem:[%s3 + $0x8d8] sm:$0xff] %v1919
  %2364 = vst [vmem:[%s3 + $0x8e0] sm:$0xff] %v1920
  %2365 = vst [vmem:[%s3 + $0x8e8] sm:$0xff] %v1921
  %2366 = vst [vmem:[%s3 + $0x8f0] sm:$0xff] %v1922
  %2367 = vst [vmem:[%s3 + $0x8f8] sm:$0xff] %v1923
  %2368 = vst [vmem:[%s3 + $0x900] sm:$0xff] %v1924
  %2369 = vst [vmem:[%s3 + $0x908] sm:$0xff] %v1925
  %2370 = vst [vmem:[%s3 + $0x910] sm:$0xff] %v1926
  %2371 = vst [vmem:[%s3 + $0x918] sm:$0xff] %v1927
  %2372 = vst [vmem:[%s3 + $0x920] sm:$0xff] %v1928
  %2373 = vst [vmem:[%s3 + $0x928] sm:$0xff] %v1929
  %2374 = vst [vmem:[%s3 + $0x930] sm:$0xff] %v1930
  %2375 = vst [vmem:[%s3 + $0x938] sm:$0xff] %v1931
  %2376 = vst [vmem:[%s3 + $0x940] sm:$0xff] %v1932
  %2377 = vst [vmem:[%s3 + $0x948] sm:$0xff] %v1933
  %2378 = vst [vmem:[%s3 + $0x950] sm:$0xff] %v1934
  %2379 = vst [vmem:[%s3 + $0x958] sm:$0xff] %v1935
  %2380 = vst [vmem:[%s3 + $0x960] sm:$0xff] %v1936
  %2381 = vst [vmem:[%s3 + $0x968] sm:$0xff] %v1937
  %2382 = vst [vmem:[%s3 + $0x970] sm:$0xff] %v1938
  %2383 = vst [vmem:[%s3 + $0x978] sm:$0xff] %v1939
  %2384 = vst [vmem:[%s3 + $0x980] sm:$0xff] %v1940
  %2385 = vst [vmem:[%s3 + $0x988] sm:$0xff] %v1941
  %2386 = vst [vmem:[%s3 + $0x990] sm:$0xff] %v1942
  %2387 = vst [vmem:[%s3 + $0x998] sm:$0xff] %v1943
  %2388 = vst [vmem:[%s3 + $0x9a0] sm:$0xff] %v1944
  %2389 = vst [vmem:[%s3 + $0x9a8] sm:$0xff] %v1945
  %2390 = vst [vmem:[%s3 + $0x9b0] sm:$0xff] %v1946
  %2391 = vst [vmem:[%s3 + $0x9b8] sm:$0xff] %v1947
  %2392 = vst [vmem:[%s3 + $0x9c0] sm:$0xff] %v1948
  %2393 = vst [vmem:[%s3 + $0x9c8] sm:$0xff] %v1949
  %2394 = vst [vmem:[%s3 + $0x9d0] sm:$0xff] %v1950
  %2395 = vst [vmem:[%s3 + $0x9d8] sm:$0xff] %v1951
  %2396 = vst [vmem:[%s3 + $0x9e0] sm:$0xff] %v1952
  %2397 = vst [vmem:[%s3 + $0x9e8] sm:$0xff] %v1953
  %2398 = vst [vmem:[%s3 + $0x9f0] sm:$0xff] %v1954
  %2399 = vst [vmem:[%s3 + $0x9f8] sm:$0xff] %v1955
  %2400 = vst [vmem:[%s3 + $0xa00] sm:$0xff] %v1956
  %2401 = vst [vmem:[%s3 + $0xa08] sm:$0xff] %v1957
  %2402 = vst [vmem:[%s3 + $0xa10] sm:$0xff] %v1958
  %2403 = vst [vmem:[%s3 + $0xa18] sm:$0xff] %v1959
  %2404 = vst [vmem:[%s3 + $0xa20] sm:$0xff] %v1960
  %2405 = vst [vmem:[%s3 + $0xa28] sm:$0xff] %v1961
  %2406 = vst [vmem:[%s3 + $0xa30] sm:$0xff] %v1962
  %2407 = vst [vmem:[%s3 + $0xa38] sm:$0xff] %v1963
  %2408 = vst [vmem:[%s3 + $0xa40] sm:$0xff] %v1964
  %2409 = vst [vmem:[%s3 + $0xa48] sm:$0xff] %v1965
  %2410 = vst [vmem:[%s3 + $0xa50] sm:$0xff] %v1966
  %2411 = vst [vmem:[%s3 + $0xa58] sm:$0xff] %v1967
  %2412 = vst [vmem:[%s3 + $0xa60] sm:$0xff] %v1968
  %2413 = vst [vmem:[%s3 + $0xa68] sm:$0xff] %v1969
  %2414 = vst [vmem:[%s3 + $0xa70] sm:$0xff] %v1970
  %2415 = vst [vmem:[%s3 + $0xa78] sm:$0xff] %v1971
  %2416 = vst [vmem:[%s3 + $0xa80] sm:$0xff] %v1972
  %2417 = vst [vmem:[%s3 + $0xa88] sm:$0xff] %v1973
  %2418 = vst [vmem:[%s3 + $0xa90] sm:$0xff] %v1974
  %2419 = vst [vmem:[%s3 + $0xa98] sm:$0xff] %v1975
  %2420 = vst [vmem:[%s3 + $0xaa0] sm:$0xff] %v1976
  %2421 = vst [vmem:[%s3 + $0xaa8] sm:$0xff] %v1977
  %2422 = vst [vmem:[%s3 + $0xab0] sm:$0xff] %v1978
  %2423 = vst [vmem:[%s3 + $0xab8] sm:$0xff] %v1979
  %2424 = vst [vmem:[%s3 + $0xac0] sm:$0xff] %v1980
  %2425 = vst [vmem:[%s3 + $0xac8] sm:$0xff] %v1981
  %2426 = vst [vmem:[%s3 + $0xad0] sm:$0xff] %v1982
  %2427 = vst [vmem:[%s3 + $0xad8] sm:$0xff] %v1983
  %2428 = vst [vmem:[%s3 + $0xae0] sm:$0xff] %v1984
  %2429 = vst [vmem:[%s3 + $0xae8] sm:$0xff] %v1985
  %2430 = vst [vmem:[%s3 + $0xaf0] sm:$0xff] %v1986
  %2431 = vst [vmem:[%s3 + $0xaf8] sm:$0xff] %v1987
  %2432 = vst [vmem:[%s3 + $0xb00] sm:$0xff] %v1988
  %2433 = vst [vmem:[%s3 + $0xb08] sm:$0xff] %v1989
  %2434 = vst [vmem:[%s3 + $0xb10] sm:$0xff] %v1990
  %2435 = vst [vmem:[%s3 + $0xb18] sm:$0xff] %v1991
  %2436 = vst [vmem:[%s3 + $0xb20] sm:$0xff] %v1992
  %2437 = vst [vmem:[%s3 + $0xb28] sm:$0xff] %v1993
  %2438 = vst [vmem:[%s3 + $0xb30] sm:$0xff] %v1994
  %2439 = vst [vmem:[%s3 + $0xb38] sm:$0xff] %v1995
  %2440 = vst [vmem:[%s3 + $0xb40] sm:$0xff] %v1996
  %2441 = vst [vmem:[%s3 + $0xb48] sm:$0xff] %v1997
  %2442 = vst [vmem:[%s3 + $0xb50] sm:$0xff] %v1998
  %2443 = vst [vmem:[%s3 + $0xb58] sm:$0xff] %v1999
  %2444 = vst [vmem:[%s3 + $0xb60] sm:$0xff] %v2000
  %2445 = vst [vmem:[%s3 + $0xb68] sm:$0xff] %v2001
  %2446 = vst [vmem:[%s3 + $0xb70] sm:$0xff] %v2002
  %2447 = vst [vmem:[%s3 + $0xb78] sm:$0xff] %v2003
  %2448 = vst [vmem:[%s3 + $0xb80] sm:$0xff] %v2004
  %2449 = vst [vmem:[%s3 + $0xb88] sm:$0xff] %v2005
  %2450 = vst [vmem:[%s3 + $0xb90] sm:$0xff] %v2006
  %2451 = vst [vmem:[%s3 + $0xb98] sm:$0xff] %v2007
  %2452 = vst [vmem:[%s3 + $0xba0] sm:$0xff] %v2008
  %2453 = vst [vmem:[%s3 + $0xba8] sm:$0xff] %v2009
  %2454 = vst [vmem:[%s3 + $0xbb0] sm:$0xff] %v2010
  %2455 = vst [vmem:[%s3 + $0xbb8] sm:$0xff] %v2011
  %2456 = vst [vmem:[%s3 + $0xbc0] sm:$0xff] %v2012
  %2457 = vst [vmem:[%s3 + $0xbc8] sm:$0xff] %v2013
  %2458 = vst [vmem:[%s3 + $0xbd0] sm:$0xff] %v2014
  %2459 = vst [vmem:[%s3 + $0xbd8] sm:$0xff] %v2015
  %2460 = vst [vmem:[%s3 + $0xbe0] sm:$0xff] %v2016
  %2461 = vst [vmem:[%s3 + $0xbe8] sm:$0xff] %v2017
  %2462 = vst [vmem:[%s3 + $0xbf0] sm:$0xff] %v2018
  %2463 = vst [vmem:[%s3 + $0xbf8] sm:$0xff] %v2019
  %2464 = vst [vmem:[%s3 + $0xc00] sm:$0xff] %v2020
  %2465 = vst [vmem:[%s3 + $0xc08] sm:$0xff] %v2021
  %2466 = vst [vmem:[%s3 + $0xc10] sm:$0xff] %v2022
  %2467 = vst [vmem:[%s3 + $0xc18] sm:$0xff] %v2023
  %2468 = vst [vmem:[%s3 + $0xc20] sm:$0xff] %v2024
  %2469 = vst [vmem:[%s3 + $0xc28] sm:$0xff] %v2025
  %2470 = vst [vmem:[%s3 + $0xc30] sm:$0xff] %v2026
  %2471 = vst [vmem:[%s3 + $0xc38] sm:$0xff] %v2027
  %2472 = vst [vmem:[%s3 + $0xc40] sm:$0xff] %v2028
  %2473 = vst [vmem:[%s3 + $0xc48] sm:$0xff] %v2029
  %2474 = vst [vmem:[%s3 + $0xc50] sm:$0xff] %v2030
  %2475 = vst [vmem:[%s3 + $0xc58] sm:$0xff] %v2031
  %2476 = vst [vmem:[%s3 + $0xc60] sm:$0xff] %v2032
  %2477 = vst [vmem:[%s3 + $0xc68] sm:$0xff] %v2033
  %2478 = vst [vmem:[%s3 + $0xc70] sm:$0xff] %v2034
  %2479 = vst [vmem:[%s3 + $0xc78] sm:$0xff] %v2035
  %2480 = vst [vmem:[%s3 + $0xc80] sm:$0xff] %v2036
  %2481 = vst [vmem:[%s3 + $0xc88] sm:$0xff] %v2037
  %2482 = vst [vmem:[%s3 + $0xc90] sm:$0xff] %v2038
  %2483 = vst [vmem:[%s3 + $0xc98] sm:$0xff] %v2039
  %2484 = vst [vmem:[%s3 + $0xca0] sm:$0xff] %v2040
  %2485 = vst [vmem:[%s3 + $0xca8] sm:$0xff] %v2041
  %2486 = vst [vmem:[%s3 + $0xcb0] sm:$0xff] %v2042
  %2487 = vst [vmem:[%s3 + $0xcb8] sm:$0xff] %v2043
  %2488 = vst [vmem:[%s3 + $0xcc0] sm:$0xff] %v2044
  %2489 = vst [vmem:[%s3 + $0xcc8] sm:$0xff] %v2045
  %2490 = vst [vmem:[%s3 + $0xcd0] sm:$0xff] %v2046
  %2491 = vst [vmem:[%s3 + $0xcd8] sm:$0xff] %v2047
  %2492 = vst [vmem:[%s3 + $0xce0] sm:$0xff] %v2048
  %2493 = vst [vmem:[%s3 + $0xce8] sm:$0xff] %v2049
  %2494 = vst [vmem:[%s3 + $0xcf0] sm:$0xff] %v2050
  %2495 = vst [vmem:[%s3 + $0xcf8] sm:$0xff] %v2051
  %2496 = vst [vmem:[%s3 + $0xd00] sm:$0xff] %v2052
  %2497 = vst [vmem:[%s3 + $0xd08] sm:$0xff] %v2053
  %2498 = vst [vmem:[%s3 + $0xd10] sm:$0xff] %v2054
  %2499 = vst [vmem:[%s3 + $0xd18] sm:$0xff] %v2055
  %2500 = vst [vmem:[%s3 + $0xd20] sm:$0xff] %v2056
  %2501 = vst [vmem:[%s3 + $0xd28] sm:$0xff] %v2057
  %2502 = vst [vmem:[%s3 + $0xd30] sm:$0xff] %v2058
  %2503 = vst [vmem:[%s3 + $0xd38] sm:$0xff] %v2059
  %2504 = vst [vmem:[%s3 + $0xd40] sm:$0xff] %v2060
  %2505 = vst [vmem:[%s3 + $0xd48] sm:$0xff] %v2061
  %2506 = vst [vmem:[%s3 + $0xd50] sm:$0xff] %v2062
  %2507 = vst [vmem:[%s3 + $0xd58] sm:$0xff] %v2063
  %2508 = vst [vmem:[%s3 + $0xd60] sm:$0xff] %v2064
  %2509 = vst [vmem:[%s3 + $0xd68] sm:$0xff] %v2065
  %2510 = vst [vmem:[%s3 + $0xd70] sm:$0xff] %v2066
  %2511 = vst [vmem:[%s3 + $0xd78] sm:$0xff] %v2067
  %2512 = vst [vmem:[%s3 + $0xd80] sm:$0xff] %v2068
  %2513 = vst [vmem:[%s3 + $0xd88] sm:$0xff] %v2069
  %2514 = vst [vmem:[%s3 + $0xd90] sm:$0xff] %v2070
  %2515 = vst [vmem:[%s3 + $0xd98] sm:$0xff] %v2071
  %2516 = vst [vmem:[%s3 + $0xda0] sm:$0xff] %v2072
  %2517 = vst [vmem:[%s3 + $0xda8] sm:$0xff] %v2073
  %2518 = vst [vmem:[%s3 + $0xdb0] sm:$0xff] %v2074
  %2519 = vst [vmem:[%s3 + $0xdb8] sm:$0xff] %v2075
  %2520 = vst [vmem:[%s3 + $0xdc0] sm:$0xff] %v2076
  %2521 = vst [vmem:[%s3 + $0xdc8] sm:$0xff] %v2077
  %2522 = vst [vmem:[%s3 + $0xdd0] sm:$0xff] %v2078
  %2523 = vst [vmem:[%s3 + $0xdd8] sm:$0xff] %v2079
  // Predicated region
  $region14: #{conv_transpose_relu.1} parent=0 // pred_check
    _
  $region15: #{conv_transpose_relu.1} parent=0 // pred_check_branch
    %2525 = sbr.rel (0) target = $region17
  $region16: #{conv_transpose_relu.1} parent=0 // pred_region
    _
  $region17: #{conv_transpose_relu.1} parent=0 // pred_fallthru
    _
  // Predicated region
  $region18: #{conv_transpose_relu.1} parent=0 // pred_check
    _
  $region19: #{conv_transpose_relu.1} parent=0 // pred_check_branch
    %2527 = sbr.rel (0) target = $region21
  $region20: #{conv_transpose_relu.1} parent=0 // pred_region
    _
  $region21: #{conv_transpose_relu.1} parent=0 // pred_fallthru
    _

</llo_original>
